<compile_context>
chip_gen: v7x
topology: tpu7x:2x2x1
jax: 0.10.0
libtpu: 0.0.40
codegen_flags: <defaults>
</compile_context>

<pallas_src>
import math

import jax
import jax.numpy as jnp
import numpy as np
from jax.experimental import pallas as pl
from jax.experimental.pallas import tpu as pltpu

# ---- small config (consistent with the module's forward) ----
B, T, C = 2, 8, 32        # batch, seq, n_embd
NH = 4                    # n_head
HD = C // NH              # head_dim = 8
HD2 = HD // 2             # 4
EPS = 1e-5                # RMSNorm eps
GELU_K = math.sqrt(2.0 / math.pi)


def block_kernel(x_ref,
                 rms1_w_ref, rms1_b_ref,
                 w_ext_ref, b_ext_ref,          # (C, 5C): [q | k | v | q_swap | k_swap]
                 t1_ref, t2_ref,                # (T, C) full-width rotary tables
                 w_proj_ref, b_proj_ref,
                 rms2_w_ref, rms2_b_ref,
                 w_fc_ref, b_fc_ref,
                 w_fcp_ref, b_fcp_ref,
                 out_ref):
    x = x_ref[...].astype(jnp.float32)                     # (T, C) — one batch per grid step

    # ---- RMSNorm 1 (rsqrt -> EUP slot) ----
    ms1 = jnp.mean(x * x, axis=-1, keepdims=True)
    h = rms1_w_ref[...] * (x * jax.lax.rsqrt(ms1 + EPS)) + rms1_b_ref[...]

    # ---- fused extended qkv projection: one (T, C) @ (C, 5C) MXU op ----
    qkv = jnp.dot(h, w_ext_ref[...], preferred_element_type=jnp.float32) + b_ext_ref[...]
    q = qkv[:, 0 * C:1 * C]       # per-head [even | odd] channel layout
    k = qkv[:, 1 * C:2 * C]
    v = qkv[:, 2 * C:3 * C]       # original per-head channel order
    qs = qkv[:, 3 * C:4 * C]      # per-head [odd | even]  (the "swapped" copies)
    ks = qkv[:, 4 * C:5 * C]

    # ---- rotary: two full-width FMAs per tensor, no lane shuffles ----
    t1 = t1_ref[...]
    t2 = t2_ref[...]
    q_rot = q * t1 + qs * t2                               # (T, C), per-head contiguous
    k_rot = k * t1 + ks * t2

    # ---- additive causal bias (finite, built once per step) ----
    row = jax.lax.broadcasted_iota(jnp.int32, (T, T), 0)
    col = jax.lax.broadcasted_iota(jnp.int32, (T, T), 1)
    bias = jnp.where(row >= col, 0.0, -1e30).astype(jnp.float32)
    scale = 1.0 / math.sqrt(HD)

    # ---- per-head scores (no k.T materialization), stacked for ONE softmax ----
    dn = (((1,), (1,)), ((), ()))                          # contract last dim of both
    s_parts = []
    for hh in range(NH):
        o = hh * HD
        s = jax.lax.dot_general(q_rot[:, o:o + HD], k_rot[:, o:o + HD], dn,
                                preferred_element_type=jnp.float32)
        s_parts.append(s * scale + bias)
    s_all = jnp.concatenate(s_parts, axis=0)               # (NH*T, T), sublane stacking

    m = jnp.max(s_all, axis=-1, keepdims=True)
    p = jnp.exp(s_all - m)
    denom = jnp.sum(p, axis=-1, keepdims=True)
    p = p * pl.reciprocal(denom, approx=False)             # exact: stays within 2e-4 tol

    # ---- pv + output projection folded together (no y materialization / scratch) ----
    wp = w_proj_ref[...]                                   # (C, C)
    acc = None
    for hh in range(NH):
        o = hh * HD
        y_h = jnp.dot(p[hh * T:(hh + 1) * T, :], v[:, o:o + HD],
                      preferred_element_type=jnp.float32)                 # (T, HD)
        contrib = jnp.dot(y_h, wp[o:o + HD, :],
                          preferred_element_type=jnp.float32)             # (T, C)
        acc = contrib if acc is None else acc + contrib

    # ---- residual 1 ----
    x2 = x + acc + b_proj_ref[...]

    # ---- RMSNorm 2 ----
    ms2 = jnp.mean(x2 * x2, axis=-1, keepdims=True)
    h2 = rms2_w_ref[...] * (x2 * jax.lax.rsqrt(ms2 + EPS)) + rms2_b_ref[...]

    # ---- MLP with new_gelu ----
    fc = jnp.dot(h2, w_fc_ref[...], preferred_element_type=jnp.float32) + b_fc_ref[...]
    g = 0.5 * fc * (1.0 + jnp.tanh(GELU_K * (fc + 0.044715 * fc * fc * fc)))
    mlp = jnp.dot(g, w_fcp_ref[...], preferred_element_type=jnp.float32) + b_fcp_ref[...]

    # ---- residual 2 ----
    out_ref[...] = (x2 + mlp).astype(out_ref.dtype)
    # TODO(synk): dropout (attn/resid/mlp) is identity at p=0.0 and therefore omitted.


def block_forward(x, params):
    """Wrapper: prepare kernel-layout params and call the Pallas kernel."""
    # Per-head channel permutations: [even-half | odd-half] and its swap [odd | even].
    even = np.arange(0, HD, 2)
    odd = np.arange(1, HD, 2)
    perm_eo = np.concatenate([h * HD + np.concatenate([even, odd]) for h in range(NH)])
    perm_oe = np.concatenate([h * HD + np.concatenate([odd, even]) for h in range(NH)])

    W = params["w_attn"].T                                 # (C, 3C); torch weight is (3C, C)
    Wq, Wk, Wv = W[:, :C], W[:, C:2 * C], W[:, 2 * C:]
    # Extended weight: [q_eo | k_eo | v | q_oe | k_oe]  ->  rotary becomes pure FMAs.
    w_ext = jnp.concatenate([Wq[:, perm_eo], Wk[:, perm_eo], Wv,
                             Wq[:, perm_oe], Wk[:, perm_oe]], axis=1)     # (C, 5C)
    bqkv = params["b_attn"]
    bq, bk, bv = bqkv[:C], bqkv[C:2 * C], bqkv[2 * C:]
    b_ext = jnp.concatenate([bq[perm_eo], bk[perm_eo], bv,
                             bq[perm_oe], bk[perm_oe]]).reshape(1, 5 * C)

    w_proj = params["w_proj"].T                            # (C, C)
    b_proj = params["b_proj"].reshape(1, C)
    w_fc = params["w_fc"].T                                # (C, 4C)
    b_fc = params["b_fc"].reshape(1, 4 * C)
    w_fcp = params["w_fcp"].T                              # (4C, C)
    b_fcp = params["b_fcp"].reshape(1, C)
    rms1_w = params["rms1_w"].reshape(1, C)
    rms1_b = params["rms1_b"].reshape(1, C)
    rms2_w = params["rms2_w"].reshape(1, C)
    rms2_b = params["rms2_b"].reshape(1, C)

    # Rotary tables (matching the torch buffer construction + its cos/sin naming swap).
    # Per head block of HD columns: T1 = [A | A], T2 = [-Bc | Bc] with A=sin(ang), Bc=cos(ang).
    pos = jnp.arange(T, dtype=jnp.float32)
    div = jnp.exp(jnp.arange(0, HD, 2, dtype=jnp.float32) * (-math.log(10000.0) / HD))
    ang = pos[:, None] * div                               # (T, HD2)
    A = jnp.sin(ang)                                       # plays the "cos" role (torch swap)
    Bc = jnp.cos(ang)                                      # plays the "sin" role
    t1 = jnp.tile(A, (1, 2 * NH))                          # (T, C)
    t2 = jnp.tile(jnp.concatenate([-Bc, Bc], axis=1), (1, NH))   # (T, C)

    x2d = x.reshape(B * T, C)

    def fixed(arr):   # whole-array, grid-invariant block
        return pl.BlockSpec(arr.shape, lambda b: (0,) * arr.ndim)

    in_specs = [
        pl.BlockSpec((T, C), lambda b: (b, 0)),            # x: one batch per grid step
        fixed(rms1_w), fixed(rms1_b),
        fixed(w_ext), fixed(b_ext),
        fixed(t1), fixed(t2),
        fixed(w_proj), fixed(b_proj),
        fixed(rms2_w), fixed(rms2_b),
        fixed(w_fc), fixed(b_fc),
        fixed(w_fcp), fixed(b_fcp),
    ]
    out_specs = pl.BlockSpec((T, C), lambda b: (b, 0))

    out2d = pl.pallas_call(
        block_kernel,
        out_shape=jax.ShapeDtypeStruct((B * T, C), jnp.float32),
        grid=(B,),
        in_specs=in_specs,
        out_specs=out_specs,
        compiler_params=pltpu.CompilerParams(dimension_semantics=("parallel",)),
    )(x2d, rms1_w, rms1_b, w_ext, b_ext, t1, t2,
      w_proj, b_proj, rms2_w, rms2_b, w_fc, b_fc, w_fcp, b_fcp)
    return out2d.reshape(B, T, C)


# ---------------- pure-JAX reference (mirrors the PyTorch code) ----------------
def block_reference(x, p):
    def rmsnorm(v, w, b):
        rms = jnp.sqrt(jnp.mean(v ** 2, axis=-1, keepdims=True) + EPS)
        return w * (v / rms) + b

    h = rmsnorm(x, p["rms1_w"], p["rms1_b"])
    qkv = h @ p["w_attn"].T + p["b_attn"]
    q, k, v = jnp.split(qkv, 3, axis=-1)
    to_heads = lambda t: t.reshape(B, T, NH, HD).transpose(0, 2, 1, 3)
    q, k, v = to_heads(q), to_heads(k), to_heads(v)

    pos = jnp.arange(T, dtype=jnp.float32)
    div = jnp.exp(jnp.arange(0, HD, 2, dtype=jnp.float32) * (-math.log(10000.0) / HD))
    ang = pos[:, None] * div
    rot = jnp.zeros((T, HD), jnp.float32)
    rot = rot.at[:, 0::2].set(jnp.sin(ang)).at[:, 1::2].set(jnp.cos(ang))
    cos, sin = rot[:, 0::2], rot[:, 1::2]

    def rope(t):
        te, to = t[..., 0::2], t[..., 1::2]
        ye = cos * te - sin * to
        yo = sin * te + cos * to
        return jnp.stack([ye, yo], axis=-1).reshape(t.shape)

    q, k = rope(q), rope(k)
    att = (q @ jnp.swapaxes(k, -1, -2)) / math.sqrt(HD)
    mask = jnp.tril(jnp.ones((T, T), bool))
    att = jnp.where(mask, att, -jnp.inf)
    att = jax.nn.softmax(att, axis=-1)
    y = (att @ v).transpose(0, 2, 1, 3).reshape(B, T, C)
    y = y @ p["w_proj"].T + p["b_proj"]
    x2 = x + y
    h2 = rmsnorm(x2, p["rms2_w"], p["rms2_b"])
    fc = h2 @ p["w_fc"].T + p["b_fc"]
    g = 0.5 * fc * (1.0 + jnp.tanh(GELU_K * (fc + 0.044715 * fc ** 3)))
    return x2 + g @ p["w_fcp"].T + p["b_fcp"]


if __name__ == "__main__":
    key = jax.random.PRNGKey(0)
    keys = jax.random.split(key, 16)
    f32 = jnp.float32

    # deterministic synthetic parameters (PyTorch weight shapes: (out_features, in_features))
    params = {
        "rms1_w": 1.0 + 0.1 * jax.random.normal(keys[0], (C,), f32),
        "rms1_b": 0.05 * jax.random.normal(keys[1], (C,), f32),
        "w_attn": 0.02 * jax.random.normal(keys[2], (3 * C, C), f32),
        "b_attn": 0.01 * jax.random.normal(keys[3], (3 * C,), f32),
        "w_proj": 0.02 * jax.random.normal(keys[4], (C, C), f32),
        "b_proj": 0.01 * jax.random.normal(keys[5], (C,), f32),
        "rms2_w": 1.0 + 0.1 * jax.random.normal(keys[6], (C,), f32),
        "rms2_b": 0.05 * jax.random.normal(keys[7], (C,), f32),
        "w_fc": 0.02 * jax.random.normal(keys[8], (4 * C, C), f32),
        "b_fc": 0.01 * jax.random.normal(keys[9], (4 * C,), f32),
        "w_fcp": 0.02 * jax.random.normal(keys[10], (C, 4 * C), f32),
        "b_fcp": 0.01 * jax.random.normal(keys[11], (C,), f32),
    }
    x = jax.random.normal(keys[12], (B, T, C), f32)

    out = block_forward(x, params)
    out = jax.block_until_ready(out)

    ref = jax.block_until_ready(block_reference(x, params))
    np.testing.assert_allclose(np.asarray(out), np.asarray(ref), rtol=2e-4, atol=2e-4)

    print("KERNEL_OK")
</pallas_src>

<mosaic_0001>
module attributes {stable_mosaic.version = 11 : i64} {
  func.func @block_kernel(%arg0: i32, %arg1: memref<8x32xf32, #tpu.memory_space<vmem>>, %arg2: memref<1x32xf32, #tpu.memory_space<vmem>>, %arg3: memref<1x32xf32, #tpu.memory_space<vmem>>, %arg4: memref<32x160xf32, #tpu.memory_space<vmem>>, %arg5: memref<1x160xf32, #tpu.memory_space<vmem>>, %arg6: memref<8x32xf32, #tpu.memory_space<vmem>>, %arg7: memref<8x32xf32, #tpu.memory_space<vmem>>, %arg8: memref<32x32xf32, #tpu.memory_space<vmem>>, %arg9: memref<1x32xf32, #tpu.memory_space<vmem>>, %arg10: memref<1x32xf32, #tpu.memory_space<vmem>>, %arg11: memref<1x32xf32, #tpu.memory_space<vmem>>, %arg12: memref<32x128xf32, #tpu.memory_space<vmem>>, %arg13: memref<1x128xf32, #tpu.memory_space<vmem>>, %arg14: memref<128x32xf32, #tpu.memory_space<vmem>>, %arg15: memref<1x32xf32, #tpu.memory_space<vmem>>, %arg16: memref<8x32xf32, #tpu.memory_space<vmem>>) attributes {dimension_semantics = [#tpu.dimension_semantics<parallel>], iteration_bounds = array<i64: 2>, scalar_prefetch = 0 : i64, scratch_operands = 0 : i64, tpu.core_type = #tpu.core_type<tc>, window_params = [{transform_indices = @transform_0, window_bounds = array<i64: 8, 32>}, {pipeline_mode = #tpu.pipeline_mode<synchronous>, transform_indices = @transform_1, window_bounds = array<i64: 1, 32>}, {pipeline_mode = #tpu.pipeline_mode<synchronous>, transform_indices = @transform_2, window_bounds = array<i64: 1, 32>}, {pipeline_mode = #tpu.pipeline_mode<synchronous>, transform_indices = @transform_3, window_bounds = array<i64: 32, 160>}, {pipeline_mode = #tpu.pipeline_mode<synchronous>, transform_indices = @transform_4, window_bounds = array<i64: 1, 160>}, {pipeline_mode = #tpu.pipeline_mode<synchronous>, transform_indices = @transform_5, window_bounds = array<i64: 8, 32>}, {pipeline_mode = #tpu.pipeline_mode<synchronous>, transform_indices = @transform_6, window_bounds = array<i64: 8, 32>}, {pipeline_mode = #tpu.pipeline_mode<synchronous>, transform_indices = @transform_7, window_bounds = array<i64: 32, 32>}, {pipeline_mode = #tpu.pipeline_mode<synchronous>, transform_indices = @transform_8, window_bounds = array<i64: 1, 32>}, {pipeline_mode = #tpu.pipeline_mode<synchronous>, transform_indices = @transform_9, window_bounds = array<i64: 1, 32>}, {pipeline_mode = #tpu.pipeline_mode<synchronous>, transform_indices = @transform_10, window_bounds = array<i64: 1, 32>}, {pipeline_mode = #tpu.pipeline_mode<synchronous>, transform_indices = @transform_11, window_bounds = array<i64: 32, 128>}, {pipeline_mode = #tpu.pipeline_mode<synchronous>, transform_indices = @transform_12, window_bounds = array<i64: 1, 128>}, {pipeline_mode = #tpu.pipeline_mode<synchronous>, transform_indices = @transform_13, window_bounds = array<i64: 128, 32>}, {pipeline_mode = #tpu.pipeline_mode<synchronous>, transform_indices = @transform_14, window_bounds = array<i64: 1, 32>}, {transform_indices = @transform_15, window_bounds = array<i64: 8, 32>}]} {
    %c0 = arith.constant 0 : index
    %c0_0 = arith.constant 0 : index
    %0 = vector.load %arg1[%c0, %c0_0] : memref<8x32xf32, #tpu.memory_space<vmem>>, vector<8x32xf32>
    %1 = arith.mulf %0, %0 : vector<8x32xf32>
    %cst = arith.constant dense<0.000000e+00> : vector<8xf32>
    %2 = vector.multi_reduction <add>, %1, %cst [1] : vector<8x32xf32> to vector<8xf32>
    %3 = vector.shape_cast %2 : vector<8xf32> to vector<8x1xf32>
    %cst_1 = arith.constant 3.200000e+01 : f32
    %4 = vector.broadcast %cst_1 : f32 to vector<8x1xf32>
    %5 = arith.divf %3, %4 : vector<8x1xf32>
    %c0_2 = arith.constant 0 : index
    %c0_3 = arith.constant 0 : index
    %6 = vector.load %arg2[%c0_2, %c0_3] : memref<1x32xf32, #tpu.memory_space<vmem>>, vector<1x32xf32>
    %cst_4 = arith.constant 9.99999974E-6 : f32
    %7 = vector.broadcast %cst_4 : f32 to vector<8x1xf32>
    %8 = arith.addf %5, %7 : vector<8x1xf32>
    %9 = math.rsqrt %8 : vector<8x1xf32>
    %10 = vector.broadcast %9 : vector<8x1xf32> to vector<8x32xf32>
    %11 = arith.mulf %0, %10 : vector<8x32xf32>
    %12 = vector.broadcast %6 : vector<1x32xf32> to vector<8x32xf32>
    %13 = arith.mulf %12, %11 : vector<8x32xf32>
    %c0_5 = arith.constant 0 : index
    %c0_6 = arith.constant 0 : index
    %14 = vector.load %arg3[%c0_5, %c0_6] : memref<1x32xf32, #tpu.memory_space<vmem>>, vector<1x32xf32>
    %15 = vector.broadcast %14 : vector<1x32xf32> to vector<8x32xf32>
    %16 = arith.addf %13, %15 : vector<8x32xf32>
    %c0_7 = arith.constant 0 : index
    %c0_8 = arith.constant 0 : index
    %17 = vector.load %arg4[%c0_7, %c0_8] : memref<32x160xf32, #tpu.memory_space<vmem>>, vector<32x160xf32>
    %cst_9 = arith.constant dense<0.000000e+00> : vector<8x160xf32>
    %18 = tpu.matmul %16, %17, %cst_9 {dimension_numbers = #tpu.dot_dimension_numbers<[1], [0], [0], [1], [0, 0, 1, 1], [], []>} : vector<8x32xf32>, vector<32x160xf32>, vector<8x160xf32> -> vector<8x160xf32>
    %c0_10 = arith.constant 0 : index
    %c0_11 = arith.constant 0 : index
    %19 = vector.load %arg5[%c0_10, %c0_11] : memref<1x160xf32, #tpu.memory_space<vmem>>, vector<1x160xf32>
    %20 = vector.broadcast %19 : vector<1x160xf32> to vector<8x160xf32>
    %21 = arith.addf %18, %20 : vector<8x160xf32>
    %22 = vector.extract_strided_slice %21 {offsets = [0, 0], sizes = [8, 32], strides = [1, 1]} : vector<8x160xf32> to vector<8x32xf32>
    %23 = vector.extract_strided_slice %21 {offsets = [0, 32], sizes = [8, 32], strides = [1, 1]} : vector<8x160xf32> to vector<8x32xf32>
    %24 = vector.extract_strided_slice %21 {offsets = [0, 64], sizes = [8, 32], strides = [1, 1]} : vector<8x160xf32> to vector<8x32xf32>
    %25 = vector.extract_strided_slice %21 {offsets = [0, 96], sizes = [8, 32], strides = [1, 1]} : vector<8x160xf32> to vector<8x32xf32>
    %26 = vector.extract_strided_slice %21 {offsets = [0, 128], sizes = [8, 32], strides = [1, 1]} : vector<8x160xf32> to vector<8x32xf32>
    %c0_12 = arith.constant 0 : index
    %c0_13 = arith.constant 0 : index
    %27 = vector.load %arg6[%c0_12, %c0_13] : memref<8x32xf32, #tpu.memory_space<vmem>>, vector<8x32xf32>
    %c0_14 = arith.constant 0 : index
    %c0_15 = arith.constant 0 : index
    %28 = vector.load %arg7[%c0_14, %c0_15] : memref<8x32xf32, #tpu.memory_space<vmem>>, vector<8x32xf32>
    %29 = arith.mulf %22, %27 : vector<8x32xf32>
    %30 = arith.mulf %25, %28 : vector<8x32xf32>
    %31 = arith.addf %29, %30 : vector<8x32xf32>
    %32 = arith.mulf %23, %27 : vector<8x32xf32>
    %33 = arith.mulf %26, %28 : vector<8x32xf32>
    %34 = arith.addf %32, %33 : vector<8x32xf32>
    %35 = tpu.iota {dimensions = array<i32: 0>} : vector<8x8xi32>
    %36 = tpu.iota {dimensions = array<i32: 1>} : vector<8x8xi32>
    %37 = arith.cmpi sge, %35, %36 : vector<8x8xi32>
    %cst_16 = arith.constant 0.000000e+00 : f32
    %cst_17 = arith.constant -1.000000e+30 : f32
    %38 = vector.broadcast %cst_16 : f32 to vector<8x8xf32>
    %39 = vector.broadcast %cst_17 : f32 to vector<8x8xf32>
    %40 = arith.select %37, %38, %39 : vector<8x8xi1>, vector<8x8xf32>
    %41 = vector.extract_strided_slice %31 {offsets = [0, 0], sizes = [8, 8], strides = [1, 1]} : vector<8x32xf32> to vector<8x8xf32>
    %42 = vector.extract_strided_slice %34 {offsets = [0, 0], sizes = [8, 8], strides = [1, 1]} : vector<8x32xf32> to vector<8x8xf32>
    %cst_18 = arith.constant dense<0.000000e+00> : vector<8x8xf32>
    %43 = tpu.matmul %41, %42, %cst_18 {dimension_numbers = #tpu.dot_dimension_numbers<[1], [1], [0], [0], [0, 0, 1, 0], [], []>} : vector<8x8xf32>, vector<8x8xf32>, vector<8x8xf32> -> vector<8x8xf32>
    %cst_19 = arith.constant 0.353553385 : f32
    %44 = vector.broadcast %cst_19 : f32 to vector<8x8xf32>
    %45 = arith.mulf %43, %44 : vector<8x8xf32>
    %46 = arith.addf %45, %40 : vector<8x8xf32>
    %47 = vector.extract_strided_slice %31 {offsets = [0, 8], sizes = [8, 8], strides = [1, 1]} : vector<8x32xf32> to vector<8x8xf32>
    %48 = vector.extract_strided_slice %34 {offsets = [0, 8], sizes = [8, 8], strides = [1, 1]} : vector<8x32xf32> to vector<8x8xf32>
    %cst_20 = arith.constant dense<0.000000e+00> : vector<8x8xf32>
    %49 = tpu.matmul %47, %48, %cst_20 {dimension_numbers = #tpu.dot_dimension_numbers<[1], [1], [0], [0], [0, 0, 1, 0], [], []>} : vector<8x8xf32>, vector<8x8xf32>, vector<8x8xf32> -> vector<8x8xf32>
    %cst_21 = arith.constant 0.353553385 : f32
    %50 = vector.broadcast %cst_21 : f32 to vector<8x8xf32>
    %51 = arith.mulf %49, %50 : vector<8x8xf32>
    %52 = arith.addf %51, %40 : vector<8x8xf32>
    %53 = vector.extract_strided_slice %31 {offsets = [0, 16], sizes = [8, 8], strides = [1, 1]} : vector<8x32xf32> to vector<8x8xf32>
    %54 = vector.extract_strided_slice %34 {offsets = [0, 16], sizes = [8, 8], strides = [1, 1]} : vector<8x32xf32> to vector<8x8xf32>
    %cst_22 = arith.constant dense<0.000000e+00> : vector<8x8xf32>
    %55 = tpu.matmul %53, %54, %cst_22 {dimension_numbers = #tpu.dot_dimension_numbers<[1], [1], [0], [0], [0, 0, 1, 0], [], []>} : vector<8x8xf32>, vector<8x8xf32>, vector<8x8xf32> -> vector<8x8xf32>
    %cst_23 = arith.constant 0.353553385 : f32
    %56 = vector.broadcast %cst_23 : f32 to vector<8x8xf32>
    %57 = arith.mulf %55, %56 : vector<8x8xf32>
    %58 = arith.addf %57, %40 : vector<8x8xf32>
    %59 = vector.extract_strided_slice %31 {offsets = [0, 24], sizes = [8, 8], strides = [1, 1]} : vector<8x32xf32> to vector<8x8xf32>
    %60 = vector.extract_strided_slice %34 {offsets = [0, 24], sizes = [8, 8], strides = [1, 1]} : vector<8x32xf32> to vector<8x8xf32>
    %cst_24 = arith.constant dense<0.000000e+00> : vector<8x8xf32>
    %61 = tpu.matmul %59, %60, %cst_24 {dimension_numbers = #tpu.dot_dimension_numbers<[1], [1], [0], [0], [0, 0, 1, 0], [], []>} : vector<8x8xf32>, vector<8x8xf32>, vector<8x8xf32> -> vector<8x8xf32>
    %cst_25 = arith.constant 0.353553385 : f32
    %62 = vector.broadcast %cst_25 : f32 to vector<8x8xf32>
    %63 = arith.mulf %61, %62 : vector<8x8xf32>
    %64 = arith.addf %63, %40 : vector<8x8xf32>
    %65 = tpu.concatenate %46, %52, %58, %64 in 0 : vector<8x8xf32>, vector<8x8xf32>, vector<8x8xf32>, vector<8x8xf32> -> vector<32x8xf32>
    %cst_26 = arith.constant dense<0xFF800000> : vector<32xf32>
    %66 = vector.multi_reduction <maximumf>, %65, %cst_26 [1] : vector<32x8xf32> to vector<32xf32>
    %67 = vector.shape_cast %66 : vector<32xf32> to vector<32x1xf32>
    %68 = vector.broadcast %67 : vector<32x1xf32> to vector<32x8xf32>
    %69 = arith.subf %65, %68 : vector<32x8xf32>
    %70 = math.exp %69 : vector<32x8xf32>
    %cst_27 = arith.constant dense<0.000000e+00> : vector<32xf32>
    %71 = vector.multi_reduction <add>, %70, %cst_27 [1] : vector<32x8xf32> to vector<32xf32>
    %72 = vector.shape_cast %71 : vector<32xf32> to vector<32x1xf32>
    %73 = tpu.reciprocal %72 : vector<32x1xf32> -> vector<32x1xf32>
    %74 = vector.broadcast %73 : vector<32x1xf32> to vector<32x8xf32>
    %75 = arith.mulf %70, %74 : vector<32x8xf32>
    %c0_28 = arith.constant 0 : index
    %c0_29 = arith.constant 0 : index
    %76 = vector.load %arg8[%c0_28, %c0_29] : memref<32x32xf32, #tpu.memory_space<vmem>>, vector<32x32xf32>
    %77 = vector.extract_strided_slice %75 {offsets = [0, 0], sizes = [8, 8], strides = [1, 1]} : vector<32x8xf32> to vector<8x8xf32>
    %78 = vector.extract_strided_slice %24 {offsets = [0, 0], sizes = [8, 8], strides = [1, 1]} : vector<8x32xf32> to vector<8x8xf32>
    %cst_30 = arith.constant dense<0.000000e+00> : vector<8x8xf32>
    %79 = tpu.matmul %77, %78, %cst_30 {dimension_numbers = #tpu.dot_dimension_numbers<[1], [0], [0], [1], [0, 0, 1, 1], [], []>} : vector<8x8xf32>, vector<8x8xf32>, vector<8x8xf32> -> vector<8x8xf32>
    %80 = vector.extract_strided_slice %76 {offsets = [0, 0], sizes = [8, 32], strides = [1, 1]} : vector<32x32xf32> to vector<8x32xf32>
    %cst_31 = arith.constant dense<0.000000e+00> : vector<8x32xf32>
    %81 = tpu.matmul %79, %80, %cst_31 {dimension_numbers = #tpu.dot_dimension_numbers<[1], [0], [0], [1], [0, 0, 1, 1], [], []>} : vector<8x8xf32>, vector<8x32xf32>, vector<8x32xf32> -> vector<8x32xf32>
    %82 = vector.extract_strided_slice %75 {offsets = [8, 0], sizes = [8, 8], strides = [1, 1]} : vector<32x8xf32> to vector<8x8xf32>
    %83 = vector.extract_strided_slice %24 {offsets = [0, 8], sizes = [8, 8], strides = [1, 1]} : vector<8x32xf32> to vector<8x8xf32>
    %cst_32 = arith.constant dense<0.000000e+00> : vector<8x8xf32>
    %84 = tpu.matmul %82, %83, %cst_32 {dimension_numbers = #tpu.dot_dimension_numbers<[1], [0], [0], [1], [0, 0, 1, 1], [], []>} : vector<8x8xf32>, vector<8x8xf32>, vector<8x8xf32> -> vector<8x8xf32>
    %85 = vector.extract_strided_slice %76 {offsets = [8, 0], sizes = [8, 32], strides = [1, 1]} : vector<32x32xf32> to vector<8x32xf32>
    %cst_33 = arith.constant dense<0.000000e+00> : vector<8x32xf32>
    %86 = tpu.matmul %84, %85, %cst_33 {dimension_numbers = #tpu.dot_dimension_numbers<[1], [0], [0], [1], [0, 0, 1, 1], [], []>} : vector<8x8xf32>, vector<8x32xf32>, vector<8x32xf32> -> vector<8x32xf32>
    %87 = arith.addf %81, %86 : vector<8x32xf32>
    %88 = vector.extract_strided_slice %75 {offsets = [16, 0], sizes = [8, 8], strides = [1, 1]} : vector<32x8xf32> to vector<8x8xf32>
    %89 = vector.extract_strided_slice %24 {offsets = [0, 16], sizes = [8, 8], strides = [1, 1]} : vector<8x32xf32> to vector<8x8xf32>
    %cst_34 = arith.constant dense<0.000000e+00> : vector<8x8xf32>
    %90 = tpu.matmul %88, %89, %cst_34 {dimension_numbers = #tpu.dot_dimension_numbers<[1], [0], [0], [1], [0, 0, 1, 1], [], []>} : vector<8x8xf32>, vector<8x8xf32>, vector<8x8xf32> -> vector<8x8xf32>
    %91 = vector.extract_strided_slice %76 {offsets = [16, 0], sizes = [8, 32], strides = [1, 1]} : vector<32x32xf32> to vector<8x32xf32>
    %cst_35 = arith.constant dense<0.000000e+00> : vector<8x32xf32>
    %92 = tpu.matmul %90, %91, %cst_35 {dimension_numbers = #tpu.dot_dimension_numbers<[1], [0], [0], [1], [0, 0, 1, 1], [], []>} : vector<8x8xf32>, vector<8x32xf32>, vector<8x32xf32> -> vector<8x32xf32>
    %93 = arith.addf %87, %92 : vector<8x32xf32>
    %94 = vector.extract_strided_slice %75 {offsets = [24, 0], sizes = [8, 8], strides = [1, 1]} : vector<32x8xf32> to vector<8x8xf32>
    %95 = vector.extract_strided_slice %24 {offsets = [0, 24], sizes = [8, 8], strides = [1, 1]} : vector<8x32xf32> to vector<8x8xf32>
    %cst_36 = arith.constant dense<0.000000e+00> : vector<8x8xf32>
    %96 = tpu.matmul %94, %95, %cst_36 {dimension_numbers = #tpu.dot_dimension_numbers<[1], [0], [0], [1], [0, 0, 1, 1], [], []>} : vector<8x8xf32>, vector<8x8xf32>, vector<8x8xf32> -> vector<8x8xf32>
    %97 = vector.extract_strided_slice %76 {offsets = [24, 0], sizes = [8, 32], strides = [1, 1]} : vector<32x32xf32> to vector<8x32xf32>
    %cst_37 = arith.constant dense<0.000000e+00> : vector<8x32xf32>
    %98 = tpu.matmul %96, %97, %cst_37 {dimension_numbers = #tpu.dot_dimension_numbers<[1], [0], [0], [1], [0, 0, 1, 1], [], []>} : vector<8x8xf32>, vector<8x32xf32>, vector<8x32xf32> -> vector<8x32xf32>
    %99 = arith.addf %93, %98 : vector<8x32xf32>
    %100 = arith.addf %0, %99 : vector<8x32xf32>
    %c0_38 = arith.constant 0 : index
    %c0_39 = arith.constant 0 : index
    %101 = vector.load %arg9[%c0_38, %c0_39] : memref<1x32xf32, #tpu.memory_space<vmem>>, vector<1x32xf32>
    %102 = vector.broadcast %101 : vector<1x32xf32> to vector<8x32xf32>
    %103 = arith.addf %100, %102 : vector<8x32xf32>
    %104 = arith.mulf %103, %103 : vector<8x32xf32>
    %cst_40 = arith.constant dense<0.000000e+00> : vector<8xf32>
    %105 = vector.multi_reduction <add>, %104, %cst_40 [1] : vector<8x32xf32> to vector<8xf32>
    %106 = vector.shape_cast %105 : vector<8xf32> to vector<8x1xf32>
    %cst_41 = arith.constant 3.200000e+01 : f32
    %107 = vector.broadcast %cst_41 : f32 to vector<8x1xf32>
    %108 = arith.divf %106, %107 : vector<8x1xf32>
    %c0_42 = arith.constant 0 : index
    %c0_43 = arith.constant 0 : index
    %109 = vector.load %arg10[%c0_42, %c0_43] : memref<1x32xf32, #tpu.memory_space<vmem>>, vector<1x32xf32>
    %cst_44 = arith.constant 9.99999974E-6 : f32
    %110 = vector.broadcast %cst_44 : f32 to vector<8x1xf32>
    %111 = arith.addf %108, %110 : vector<8x1xf32>
    %112 = math.rsqrt %111 : vector<8x1xf32>
    %113 = vector.broadcast %112 : vector<8x1xf32> to vector<8x32xf32>
    %114 = arith.mulf %103, %113 : vector<8x32xf32>
    %115 = vector.broadcast %109 : vector<1x32xf32> to vector<8x32xf32>
    %116 = arith.mulf %115, %114 : vector<8x32xf32>
    %c0_45 = arith.constant 0 : index
    %c0_46 = arith.constant 0 : index
    %117 = vector.load %arg11[%c0_45, %c0_46] : memref<1x32xf32, #tpu.memory_space<vmem>>, vector<1x32xf32>
    %118 = vector.broadcast %117 : vector<1x32xf32> to vector<8x32xf32>
    %119 = arith.addf %116, %118 : vector<8x32xf32>
    %c0_47 = arith.constant 0 : index
    %c0_48 = arith.constant 0 : index
    %120 = vector.load %arg12[%c0_47, %c0_48] : memref<32x128xf32, #tpu.memory_space<vmem>>, vector<32x128xf32>
    %cst_49 = arith.constant dense<0.000000e+00> : vector<8x128xf32>
    %121 = tpu.matmul %119, %120, %cst_49 {dimension_numbers = #tpu.dot_dimension_numbers<[1], [0], [0], [1], [0, 0, 1, 1], [], []>} : vector<8x32xf32>, vector<32x128xf32>, vector<8x128xf32> -> vector<8x128xf32>
    %c0_50 = arith.constant 0 : index
    %c0_51 = arith.constant 0 : index
    %122 = vector.load %arg13[%c0_50, %c0_51] : memref<1x128xf32, #tpu.memory_space<vmem>>, vector<1x128xf32>
    %123 = vector.broadcast %122 : vector<1x128xf32> to vector<8x128xf32>
    %124 = arith.addf %121, %123 : vector<8x128xf32>
    %cst_52 = arith.constant 5.000000e-01 : f32
    %125 = vector.broadcast %cst_52 : f32 to vector<8x128xf32>
    %126 = arith.mulf %125, %124 : vector<8x128xf32>
    %cst_53 = arith.constant 4.471500e-02 : f32
    %127 = vector.broadcast %cst_53 : f32 to vector<8x128xf32>
    %128 = arith.mulf %127, %124 : vector<8x128xf32>
    %129 = arith.mulf %128, %124 : vector<8x128xf32>
    %130 = arith.mulf %129, %124 : vector<8x128xf32>
    %131 = arith.addf %124, %130 : vector<8x128xf32>
    %cst_54 = arith.constant 0.797884583 : f32
    %132 = vector.broadcast %cst_54 : f32 to vector<8x128xf32>
    %133 = arith.mulf %132, %131 : vector<8x128xf32>
    %134 = math.tanh %133 : vector<8x128xf32>
    %cst_55 = arith.constant 1.000000e+00 : f32
    %135 = vector.broadcast %cst_55 : f32 to vector<8x128xf32>
    %136 = arith.addf %135, %134 : vector<8x128xf32>
    %137 = arith.mulf %126, %136 : vector<8x128xf32>
    %c0_56 = arith.constant 0 : index
    %c0_57 = arith.constant 0 : index
    %138 = vector.load %arg14[%c0_56, %c0_57] : memref<128x32xf32, #tpu.memory_space<vmem>>, vector<128x32xf32>
    %cst_58 = arith.constant dense<0.000000e+00> : vector<8x32xf32>
    %139 = tpu.matmul %137, %138, %cst_58 {dimension_numbers = #tpu.dot_dimension_numbers<[1], [0], [0], [1], [0, 0, 1, 1], [], []>} : vector<8x128xf32>, vector<128x32xf32>, vector<8x32xf32> -> vector<8x32xf32>
    %c0_59 = arith.constant 0 : index
    %c0_60 = arith.constant 0 : index
    %140 = vector.load %arg15[%c0_59, %c0_60] : memref<1x32xf32, #tpu.memory_space<vmem>>, vector<1x32xf32>
    %141 = vector.broadcast %140 : vector<1x32xf32> to vector<8x32xf32>
    %142 = arith.addf %139, %141 : vector<8x32xf32>
    %143 = arith.addf %103, %142 : vector<8x32xf32>
    %c0_61 = arith.constant 0 : index
    %c0_62 = arith.constant 0 : index
    %144 = vector.load %arg16[%c0_61, %c0_62] : memref<8x32xf32, #tpu.memory_space<vmem>>, vector<8x32xf32>
    tpu.vector_store %arg16[%c0_61, %c0_62], %143 {strides = array<i32>} : memref<8x32xf32, #tpu.memory_space<vmem>>, vector<8x32xf32>,
    return
  }
  func.func @transform_0(%arg0: i32) -> (i32, i32) {
    %c0_i32 = arith.constant 0 : i32
    %c0_i32_0 = arith.constant 0 : i32
    return %arg0, %c0_i32 : i32, i32
  }
  func.func @transform_1(%arg0: i32) -> (i32, i32) {
    %c0_i32 = arith.constant 0 : i32
    %c0_i32_0 = arith.constant 0 : i32
    %c0_i32_1 = arith.constant 0 : i32
    return %c0_i32, %c0_i32_0 : i32, i32
  }
  func.func @transform_2(%arg0: i32) -> (i32, i32) {
    %c0_i32 = arith.constant 0 : i32
    %c0_i32_0 = arith.constant 0 : i32
    %c0_i32_1 = arith.constant 0 : i32
    return %c0_i32, %c0_i32_0 : i32, i32
  }
  func.func @transform_3(%arg0: i32) -> (i32, i32) {
    %c0_i32 = arith.constant 0 : i32
    %c0_i32_0 = arith.constant 0 : i32
    %c0_i32_1 = arith.constant 0 : i32
    return %c0_i32, %c0_i32_0 : i32, i32
  }
  func.func @transform_4(%arg0: i32) -> (i32, i32) {
    %c0_i32 = arith.constant 0 : i32
    %c0_i32_0 = arith.constant 0 : i32
    %c0_i32_1 = arith.constant 0 : i32
    return %c0_i32, %c0_i32_0 : i32, i32
  }
  func.func @transform_5(%arg0: i32) -> (i32, i32) {
    %c0_i32 = arith.constant 0 : i32
    %c0_i32_0 = arith.constant 0 : i32
    %c0_i32_1 = arith.constant 0 : i32
    return %c0_i32, %c0_i32_0 : i32, i32
  }
  func.func @transform_6(%arg0: i32) -> (i32, i32) {
    %c0_i32 = arith.constant 0 : i32
    %c0_i32_0 = arith.constant 0 : i32
    %c0_i32_1 = arith.constant 0 : i32
    return %c0_i32, %c0_i32_0 : i32, i32
  }
  func.func @transform_7(%arg0: i32) -> (i32, i32) {
    %c0_i32 = arith.constant 0 : i32
    %c0_i32_0 = arith.constant 0 : i32
    %c0_i32_1 = arith.constant 0 : i32
    return %c0_i32, %c0_i32_0 : i32, i32
  }
  func.func @transform_8(%arg0: i32) -> (i32, i32) {
    %c0_i32 = arith.constant 0 : i32
    %c0_i32_0 = arith.constant 0 : i32
    %c0_i32_1 = arith.constant 0 : i32
    return %c0_i32, %c0_i32_0 : i32, i32
  }
  func.func @transform_9(%arg0: i32) -> (i32, i32) {
    %c0_i32 = arith.constant 0 : i32
    %c0_i32_0 = arith.constant 0 : i32
    %c0_i32_1 = arith.constant 0 : i32
    return %c0_i32, %c0_i32_0 : i32, i32
  }
  func.func @transform_10(%arg0: i32) -> (i32, i32) {
    %c0_i32 = arith.constant 0 : i32
    %c0_i32_0 = arith.constant 0 : i32
    %c0_i32_1 = arith.constant 0 : i32
    return %c0_i32, %c0_i32_0 : i32, i32
  }
  func.func @transform_11(%arg0: i32) -> (i32, i32) {
    %c0_i32 = arith.constant 0 : i32
    %c0_i32_0 = arith.constant 0 : i32
    %c0_i32_1 = arith.constant 0 : i32
    return %c0_i32, %c0_i32_0 : i32, i32
  }
  func.func @transform_12(%arg0: i32) -> (i32, i32) {
    %c0_i32 = arith.constant 0 : i32
    %c0_i32_0 = arith.constant 0 : i32
    %c0_i32_1 = arith.constant 0 : i32
    return %c0_i32, %c0_i32_0 : i32, i32
  }
  func.func @transform_13(%arg0: i32) -> (i32, i32) {
    %c0_i32 = arith.constant 0 : i32
    %c0_i32_0 = arith.constant 0 : i32
    %c0_i32_1 = arith.constant 0 : i32
    return %c0_i32, %c0_i32_0 : i32, i32
  }
  func.func @transform_14(%arg0: i32) -> (i32, i32) {
    %c0_i32 = arith.constant 0 : i32
    %c0_i32_0 = arith.constant 0 : i32
    %c0_i32_1 = arith.constant 0 : i32
    return %c0_i32, %c0_i32_0 : i32, i32
  }
  func.func @transform_15(%arg0: i32) -> (i32, i32) {
    %c0_i32 = arith.constant 0 : i32
    %c0_i32_0 = arith.constant 0 : i32
    return %arg0, %c0_i32 : i32, i32
  }
}

</mosaic_0001>

<llo_original>
// kernel: tpu_custom_call.1
$region0: #{tpu_custom_call.1}
  #allocation0 [shape = 'u32[]', space=smem, size = 0x4, offset = 0x4, fixed_abs, tag = 'smem constant byte address 0x4 - core index']
  #allocation1 [shape = 'u32[144,128]{1,0:T(1,128)}', space=vmem, size = 0x12000, scoped, tag = 'internal scratch']
  %s0 = inlined_call_operand.vmem [shape: f32[16,32], index: 0, kind: input, shape index: {}]
  %s1 = inlined_call_operand.vmem [shape: f32[1,32], index: 1, kind: input, shape index: {}]
  %s2 = inlined_call_operand.vmem [shape: f32[1,32], index: 2, kind: input, shape index: {}]
  %s3 = inlined_call_operand.vmem [shape: f32[32,160], index: 3, kind: input, shape index: {}]
  %s4 = inlined_call_operand.vmem [shape: f32[1,160], index: 4, kind: input, shape index: {}]
  %s5 = inlined_call_operand.vmem [shape: f32[8,32], index: 5, kind: input, shape index: {}]
  %s6 = inlined_call_operand.vmem [shape: f32[8,32], index: 6, kind: input, shape index: {}]
  %s7 = inlined_call_operand.vmem [shape: f32[32,32], index: 7, kind: input, shape index: {}]
  %s8 = inlined_call_operand.vmem [shape: f32[1,32], index: 8, kind: input, shape index: {}]
  %s9 = inlined_call_operand.vmem [shape: f32[1,32], index: 9, kind: input, shape index: {}]
  %s10 = inlined_call_operand.vmem [shape: f32[1,32], index: 10, kind: input, shape index: {}]
  %s11 = inlined_call_operand.vmem [shape: f32[32,128], index: 11, kind: input, shape index: {}]
  %s12 = inlined_call_operand.vmem [shape: f32[1,128], index: 12, kind: input, shape index: {}]
  %s13 = inlined_call_operand.vmem [shape: f32[128,32], index: 13, kind: input, shape index: {}]
  %s14 = inlined_call_operand.vmem [shape: f32[1,32], index: 14, kind: input, shape index: {}]
  %s15 = inlined_call_operand.hbm [shape: f32[16,32], index: 15, kind: output, shape index: {}]
  %s16 = sld [smem:[#allocation0]]
  $region93: #{tpu_custom_call.1} parent=0
    _
  %s18 = ssub.s32 1, %s16
  %s19 = scalar_select 0, %s18, %s16
  $region1: #{tpu_custom_call.1} parent=0
    #allocation2 [shape = 'u8[8192]{0}', space=vmem, size = 0x2000, scoped, tag = 'output window, operand 0']
    #allocation3 [shape = 's32[2]{0}', space=sflag, size = 0x8, scoped, tag = 'scoped memory for tpu_custom_call.1']
    %20 = vsyncpa [#allocation3], 0
    %s21 = scalar_lea.sflag [#allocation3], 1
    %22 = vsyncpa %s21, 0
    loop: start=0, step=1, limit=4
    $region2: #{tpu_custom_call.1} parent=1 // loop_pre_header
      _
    $region3: #{tpu_custom_call.1} parent=1 // loop_header
      %s24 = sphi 0, %s28
      %p25 = scmp.ge.s32.totalorder %s24, 4
      %s34 = sphi 0, %s36
      %s37 = sphi 0, %s34
      %s38 = sphi 0, %s37
      %s54 = sphi 0, %s38
      %s58 = sphi 0, %s58
      %s60 = sphi 0, %s58
      %s61 = sphi 0, %s60
      %s75 = sphi 0, %s61
      %s79 = sphi 0, %s79
      %s81 = sphi 0, %s79
      %s82 = sphi 0, %s81
      %s96 = sphi 0, %s82
      %s100 = sphi 0, %s100
      %s102 = sphi 0, %s100
      %s103 = sphi 0, %s102
      %s117 = sphi 0, %s103
      %s121 = sphi 0, %s121
      %s123 = sphi 0, %s121
      %s124 = sphi 0, %s123
      %s138 = sphi 0, %s124
      %s142 = sphi 0, %s142
      %s144 = sphi 0, %s142
      %s145 = sphi 0, %s144
      %s159 = sphi 0, %s145
      %s163 = sphi 0, %s163
      %s165 = sphi 0, %s163
      %s166 = sphi 0, %s165
      %s180 = sphi 0, %s166
      %s184 = sphi 0, %s184
      %s186 = sphi 0, %s184
      %s187 = sphi 0, %s186
      %s201 = sphi 0, %s187
      %s205 = sphi 0, %s205
      %s207 = sphi 0, %s205
      %s208 = sphi 0, %s207
      %s222 = sphi 0, %s208
      %s226 = sphi 0, %s226
      %s228 = sphi 0, %s226
      %s229 = sphi 0, %s228
      %s243 = sphi 0, %s229
      %s247 = sphi 0, %s247
      %s249 = sphi 0, %s247
      %s250 = sphi 0, %s249
      %s264 = sphi 0, %s250
      %s268 = sphi 0, %s268
      %s270 = sphi 0, %s268
      %s271 = sphi 0, %s270
      %s285 = sphi 0, %s271
      %s289 = sphi 0, %s289
      %s291 = sphi 0, %s289
      %s292 = sphi 0, %s291
      %s306 = sphi 0, %s292
      %s310 = sphi 0, %s310
      %s312 = sphi 0, %s310
      %s313 = sphi 0, %s312
      %s327 = sphi 0, %s313
      %s331 = sphi 0, %s331
      %s333 = sphi 0, %s331
      %s334 = sphi 0, %s333
      %s348 = sphi 0, %s334
      %s354 = sphi 0, %s356
      %s357 = sphi 0, %s354
      %s358 = sphi 0, %s357
      %s374 = sphi 0, %s358
    $region4: #{tpu_custom_call.1} parent=1 // loop_header_branch
      %27 = sbr.rel (%p25) target = $region8
    $region5: #{tpu_custom_call.1} parent=1 // loop_body
      %s29 = ssub.s32 %s24, 1
      %s30 = ssub.s32 %s24, 2
      %s31 = sadd.s32 %s24, 1
      %s32 = ssub.s32 %s24, %s31
      %p33 = scmp.eq.s32.totalorder %s32, 0
      %s35 = sadd.s32 %s34, 1
      %s36 = scalar_select %p33, %s34, %s35
      %p39 = pneg %p33
      %p40 = scmp.eq.s32.totalorder %s24, 1
      %p41 = por %p39, %p40
      %p42 = scmp.ne.s32.totalorder %s34, %s37
      %p43 = scmp.eq.s32.totalorder %s24, 0
      %p44 = por %p42, %p43
      %p45 = scmp.ne.s32.totalorder %s34, %s37
      %p46 = scmp.eq.s32.totalorder %s29, 1
      %p47 = por %p45, %p46
      %p48 = scmp.ne.s32.totalorder %s37, %s38
      %p49 = scmp.eq.s32.totalorder %s29, 0
      %p50 = por %p48, %p49
      %p51 = scmp.ne.s32.totalorder %s37, %s38
      %p52 = scmp.eq.s32.totalorder %s30, 1
      %p53 = por %p51, %p52
      %p55 = scmp.ne.s32.totalorder %s38, %s54
      %p56 = scmp.eq.s32.totalorder %s30, 0
      %p57 = por %p55, %p56
      %s59 = sadd.s32 %s58, 1
      %p62 = scmp.eq.s32.totalorder %s24, 1
      %p63 = scmp.ne.s32.totalorder %s58, %s60
      %p64 = scmp.eq.s32.totalorder %s24, 0
      %p65 = por %p63, %p64
      %p66 = scmp.ne.s32.totalorder %s58, %s60
      %p67 = scmp.eq.s32.totalorder %s29, 1
      %p68 = por %p66, %p67
      %p69 = scmp.ne.s32.totalorder %s60, %s61
      %p70 = scmp.eq.s32.totalorder %s29, 0
      %p71 = por %p69, %p70
      %p72 = scmp.ne.s32.totalorder %s60, %s61
      %p73 = scmp.eq.s32.totalorder %s30, 1
      %p74 = por %p72, %p73
      %p76 = scmp.ne.s32.totalorder %s61, %s75
      %p77 = scmp.eq.s32.totalorder %s30, 0
      %p78 = por %p76, %p77
      %s80 = sadd.s32 %s79, 1
      %p83 = scmp.eq.s32.totalorder %s24, 1
      %p84 = scmp.ne.s32.totalorder %s79, %s81
      %p85 = scmp.eq.s32.totalorder %s24, 0
      %p86 = por %p84, %p85
      %p87 = scmp.ne.s32.totalorder %s79, %s81
      %p88 = scmp.eq.s32.totalorder %s29, 1
      %p89 = por %p87, %p88
      %p90 = scmp.ne.s32.totalorder %s81, %s82
      %p91 = scmp.eq.s32.totalorder %s29, 0
      %p92 = por %p90, %p91
      %p93 = scmp.ne.s32.totalorder %s81, %s82
      %p94 = scmp.eq.s32.totalorder %s30, 1
      %p95 = por %p93, %p94
      %p97 = scmp.ne.s32.totalorder %s82, %s96
      %p98 = scmp.eq.s32.totalorder %s30, 0
      %p99 = por %p97, %p98
      %s101 = sadd.s32 %s100, 1
      %p104 = scmp.eq.s32.totalorder %s24, 1
      %p105 = scmp.ne.s32.totalorder %s100, %s102
      %p106 = scmp.eq.s32.totalorder %s24, 0
      %p107 = por %p105, %p106
      %p108 = scmp.ne.s32.totalorder %s100, %s102
      %p109 = scmp.eq.s32.totalorder %s29, 1
      %p110 = por %p108, %p109
      %p111 = scmp.ne.s32.totalorder %s102, %s103
      %p112 = scmp.eq.s32.totalorder %s29, 0
      %p113 = por %p111, %p112
      %p114 = scmp.ne.s32.totalorder %s102, %s103
      %p115 = scmp.eq.s32.totalorder %s30, 1
      %p116 = por %p114, %p115
      %p118 = scmp.ne.s32.totalorder %s103, %s117
      %p119 = scmp.eq.s32.totalorder %s30, 0
      %p120 = por %p118, %p119
      %s122 = sadd.s32 %s121, 1
      %p125 = scmp.eq.s32.totalorder %s24, 1
      %p126 = scmp.ne.s32.totalorder %s121, %s123
      %p127 = scmp.eq.s32.totalorder %s24, 0
      %p128 = por %p126, %p127
      %p129 = scmp.ne.s32.totalorder %s121, %s123
      %p130 = scmp.eq.s32.totalorder %s29, 1
      %p131 = por %p129, %p130
      %p132 = scmp.ne.s32.totalorder %s123, %s124
      %p133 = scmp.eq.s32.totalorder %s29, 0
      %p134 = por %p132, %p133
      %p135 = scmp.ne.s32.totalorder %s123, %s124
      %p136 = scmp.eq.s32.totalorder %s30, 1
      %p137 = por %p135, %p136
      %p139 = scmp.ne.s32.totalorder %s124, %s138
      %p140 = scmp.eq.s32.totalorder %s30, 0
      %p141 = por %p139, %p140
      %s143 = sadd.s32 %s142, 1
      %p146 = scmp.eq.s32.totalorder %s24, 1
      %p147 = scmp.ne.s32.totalorder %s142, %s144
      %p148 = scmp.eq.s32.totalorder %s24, 0
      %p149 = por %p147, %p148
      %p150 = scmp.ne.s32.totalorder %s142, %s144
      %p151 = scmp.eq.s32.totalorder %s29, 1
      %p152 = por %p150, %p151
      %p153 = scmp.ne.s32.totalorder %s144, %s145
      %p154 = scmp.eq.s32.totalorder %s29, 0
      %p155 = por %p153, %p154
      %p156 = scmp.ne.s32.totalorder %s144, %s145
      %p157 = scmp.eq.s32.totalorder %s30, 1
      %p158 = por %p156, %p157
      %p160 = scmp.ne.s32.totalorder %s145, %s159
      %p161 = scmp.eq.s32.totalorder %s30, 0
      %p162 = por %p160, %p161
      %s164 = sadd.s32 %s163, 1
      %p167 = scmp.eq.s32.totalorder %s24, 1
      %p168 = scmp.ne.s32.totalorder %s163, %s165
      %p169 = scmp.eq.s32.totalorder %s24, 0
      %p170 = por %p168, %p169
      %p171 = scmp.ne.s32.totalorder %s163, %s165
      %p172 = scmp.eq.s32.totalorder %s29, 1
      %p173 = por %p171, %p172
      %p174 = scmp.ne.s32.totalorder %s165, %s166
      %p175 = scmp.eq.s32.totalorder %s29, 0
      %p176 = por %p174, %p175
      %p177 = scmp.ne.s32.totalorder %s165, %s166
      %p178 = scmp.eq.s32.totalorder %s30, 1
      %p179 = por %p177, %p178
      %p181 = scmp.ne.s32.totalorder %s166, %s180
      %p182 = scmp.eq.s32.totalorder %s30, 0
      %p183 = por %p181, %p182
      %s185 = sadd.s32 %s184, 1
      %p188 = scmp.eq.s32.totalorder %s24, 1
      %p189 = scmp.ne.s32.totalorder %s184, %s186
      %p190 = scmp.eq.s32.totalorder %s24, 0
      %p191 = por %p189, %p190
      %p192 = scmp.ne.s32.totalorder %s184, %s186
      %p193 = scmp.eq.s32.totalorder %s29, 1
      %p194 = por %p192, %p193
      %p195 = scmp.ne.s32.totalorder %s186, %s187
      %p196 = scmp.eq.s32.totalorder %s29, 0
      %p197 = por %p195, %p196
      %p198 = scmp.ne.s32.totalorder %s186, %s187
      %p199 = scmp.eq.s32.totalorder %s30, 1
      %p200 = por %p198, %p199
      %p202 = scmp.ne.s32.totalorder %s187, %s201
      %p203 = scmp.eq.s32.totalorder %s30, 0
      %p204 = por %p202, %p203
      %s206 = sadd.s32 %s205, 1
      %p209 = scmp.eq.s32.totalorder %s24, 1
      %p210 = scmp.ne.s32.totalorder %s205, %s207
      %p211 = scmp.eq.s32.totalorder %s24, 0
      %p212 = por %p210, %p211
      %p213 = scmp.ne.s32.totalorder %s205, %s207
      %p214 = scmp.eq.s32.totalorder %s29, 1
      %p215 = por %p213, %p214
      %p216 = scmp.ne.s32.totalorder %s207, %s208
      %p217 = scmp.eq.s32.totalorder %s29, 0
      %p218 = por %p216, %p217
      %p219 = scmp.ne.s32.totalorder %s207, %s208
      %p220 = scmp.eq.s32.totalorder %s30, 1
      %p221 = por %p219, %p220
      %p223 = scmp.ne.s32.totalorder %s208, %s222
      %p224 = scmp.eq.s32.totalorder %s30, 0
      %p225 = por %p223, %p224
      %s227 = sadd.s32 %s226, 1
      %p230 = scmp.eq.s32.totalorder %s24, 1
      %p231 = scmp.ne.s32.totalorder %s226, %s228
      %p232 = scmp.eq.s32.totalorder %s24, 0
      %p233 = por %p231, %p232
      %p234 = scmp.ne.s32.totalorder %s226, %s228
      %p235 = scmp.eq.s32.totalorder %s29, 1
      %p236 = por %p234, %p235
      %p237 = scmp.ne.s32.totalorder %s228, %s229
      %p238 = scmp.eq.s32.totalorder %s29, 0
      %p239 = por %p237, %p238
      %p240 = scmp.ne.s32.totalorder %s228, %s229
      %p241 = scmp.eq.s32.totalorder %s30, 1
      %p242 = por %p240, %p241
      %p244 = scmp.ne.s32.totalorder %s229, %s243
      %p245 = scmp.eq.s32.totalorder %s30, 0
      %p246 = por %p244, %p245
      %s248 = sadd.s32 %s247, 1
      %p251 = scmp.eq.s32.totalorder %s24, 1
      %p252 = scmp.ne.s32.totalorder %s247, %s249
      %p253 = scmp.eq.s32.totalorder %s24, 0
      %p254 = por %p252, %p253
      %p255 = scmp.ne.s32.totalorder %s247, %s249
      %p256 = scmp.eq.s32.totalorder %s29, 1
      %p257 = por %p255, %p256
      %p258 = scmp.ne.s32.totalorder %s249, %s250
      %p259 = scmp.eq.s32.totalorder %s29, 0
      %p260 = por %p258, %p259
      %p261 = scmp.ne.s32.totalorder %s249, %s250
      %p262 = scmp.eq.s32.totalorder %s30, 1
      %p263 = por %p261, %p262
      %p265 = scmp.ne.s32.totalorder %s250, %s264
      %p266 = scmp.eq.s32.totalorder %s30, 0
      %p267 = por %p265, %p266
      %s269 = sadd.s32 %s268, 1
      %p272 = scmp.eq.s32.totalorder %s24, 1
      %p273 = scmp.ne.s32.totalorder %s268, %s270
      %p274 = scmp.eq.s32.totalorder %s24, 0
      %p275 = por %p273, %p274
      %p276 = scmp.ne.s32.totalorder %s268, %s270
      %p277 = scmp.eq.s32.totalorder %s29, 1
      %p278 = por %p276, %p277
      %p279 = scmp.ne.s32.totalorder %s270, %s271
      %p280 = scmp.eq.s32.totalorder %s29, 0
      %p281 = por %p279, %p280
      %p282 = scmp.ne.s32.totalorder %s270, %s271
      %p283 = scmp.eq.s32.totalorder %s30, 1
      %p284 = por %p282, %p283
      %p286 = scmp.ne.s32.totalorder %s271, %s285
      %p287 = scmp.eq.s32.totalorder %s30, 0
      %p288 = por %p286, %p287
      %s290 = sadd.s32 %s289, 1
      %p293 = scmp.eq.s32.totalorder %s24, 1
      %p294 = scmp.ne.s32.totalorder %s289, %s291
      %p295 = scmp.eq.s32.totalorder %s24, 0
      %p296 = por %p294, %p295
      %p297 = scmp.ne.s32.totalorder %s289, %s291
      %p298 = scmp.eq.s32.totalorder %s29, 1
      %p299 = por %p297, %p298
      %p300 = scmp.ne.s32.totalorder %s291, %s292
      %p301 = scmp.eq.s32.totalorder %s29, 0
      %p302 = por %p300, %p301
      %p303 = scmp.ne.s32.totalorder %s291, %s292
      %p304 = scmp.eq.s32.totalorder %s30, 1
      %p305 = por %p303, %p304
      %p307 = scmp.ne.s32.totalorder %s292, %s306
      %p308 = scmp.eq.s32.totalorder %s30, 0
      %p309 = por %p307, %p308
      %s311 = sadd.s32 %s310, 1
      %p314 = scmp.eq.s32.totalorder %s24, 1
      %p315 = scmp.ne.s32.totalorder %s310, %s312
      %p316 = scmp.eq.s32.totalorder %s24, 0
      %p317 = por %p315, %p316
      %p318 = scmp.ne.s32.totalorder %s310, %s312
      %p319 = scmp.eq.s32.totalorder %s29, 1
      %p320 = por %p318, %p319
      %p321 = scmp.ne.s32.totalorder %s312, %s313
      %p322 = scmp.eq.s32.totalorder %s29, 0
      %p323 = por %p321, %p322
      %p324 = scmp.ne.s32.totalorder %s312, %s313
      %p325 = scmp.eq.s32.totalorder %s30, 1
      %p326 = por %p324, %p325
      %p328 = scmp.ne.s32.totalorder %s313, %s327
      %p329 = scmp.eq.s32.totalorder %s30, 0
      %p330 = por %p328, %p329
      %s332 = sadd.s32 %s331, 1
      %p335 = scmp.eq.s32.totalorder %s24, 1
      %p336 = scmp.ne.s32.totalorder %s331, %s333
      %p337 = scmp.eq.s32.totalorder %s24, 0
      %p338 = por %p336, %p337
      %p339 = scmp.ne.s32.totalorder %s331, %s333
      %p340 = scmp.eq.s32.totalorder %s29, 1
      %p341 = por %p339, %p340
      %p342 = scmp.ne.s32.totalorder %s333, %s334
      %p343 = scmp.eq.s32.totalorder %s29, 0
      %p344 = por %p342, %p343
      %p345 = scmp.ne.s32.totalorder %s333, %s334
      %p346 = scmp.eq.s32.totalorder %s30, 1
      %p347 = por %p345, %p346
      %p349 = scmp.ne.s32.totalorder %s334, %s348
      %p350 = scmp.eq.s32.totalorder %s30, 0
      %p351 = por %p349, %p350
      %s352 = ssub.s32 %s24, %s31
      %p353 = scmp.eq.s32.totalorder %s352, 0
      %s355 = sadd.s32 %s354, 1
      %s356 = scalar_select %p353, %s354, %s355
      %p359 = pneg %p353
      %p360 = scmp.eq.s32.totalorder %s24, 1
      %p361 = por %p359, %p360
      %p362 = scmp.ne.s32.totalorder %s354, %s357
      %p363 = scmp.eq.s32.totalorder %s24, 0
      %p364 = por %p362, %p363
      %p365 = scmp.ne.s32.totalorder %s354, %s357
      %p366 = scmp.eq.s32.totalorder %s29, 1
      %p367 = por %p365, %p366
      %p368 = scmp.ne.s32.totalorder %s357, %s358
      %p369 = scmp.eq.s32.totalorder %s29, 0
      %p370 = por %p368, %p369
      %p371 = scmp.ne.s32.totalorder %s357, %s358
      %p372 = scmp.eq.s32.totalorder %s30, 1
      %p373 = por %p371, %p372
      %p375 = scmp.ne.s32.totalorder %s358, %s374
      %p376 = scmp.eq.s32.totalorder %s30, 0
      %p377 = por %p375, %p376
      %p378 = scmp.le.s32.totalorder 1, %s24
      %p379 = scmp.lt.s32.totalorder %s24, 3
      %p380 = pnand %p378, %p379
      %p381 = pneg %p380
      // Predicated region
      $region9: #{tpu_custom_call.1} parent=5 // pred_check
        _
      $region10: #{tpu_custom_call.1} parent=5 // pred_check_branch
        %383 = sbr.rel (%p380) target = $region12
      $region11: #{tpu_custom_call.1} parent=5 // pred_region
        %s384 = ssub.s32 %s24, 1
        // Predicated region
        $region13: #{tpu_custom_call.1} parent=11 // pred_check
          %p385 = pneg %p71
        $region14: #{tpu_custom_call.1} parent=11 // pred_check_branch
          %387 = sbr.rel (%p385) target = $region16
        $region15: #{tpu_custom_call.1} parent=11 // pred_region
          _
        $region16: #{tpu_custom_call.1} parent=11 // pred_fallthru
          _
        // Predicated region
        $region17: #{tpu_custom_call.1} parent=11 // pred_check
          %p388 = pneg %p92
        $region18: #{tpu_custom_call.1} parent=11 // pred_check_branch
          %390 = sbr.rel (%p388) target = $region20
        $region19: #{tpu_custom_call.1} parent=11 // pred_region
          _
        $region20: #{tpu_custom_call.1} parent=11 // pred_fallthru
          _
        // Predicated region
        $region21: #{tpu_custom_call.1} parent=11 // pred_check
          %p391 = pneg %p113
        $region22: #{tpu_custom_call.1} parent=11 // pred_check_branch
          %393 = sbr.rel (%p391) target = $region24
        $region23: #{tpu_custom_call.1} parent=11 // pred_region
          _
        $region24: #{tpu_custom_call.1} parent=11 // pred_fallthru
          _
        // Predicated region
        $region25: #{tpu_custom_call.1} parent=11 // pred_check
          %p394 = pneg %p134
        $region26: #{tpu_custom_call.1} parent=11 // pred_check_branch
          %396 = sbr.rel (%p394) target = $region28
        $region27: #{tpu_custom_call.1} parent=11 // pred_region
          _
        $region28: #{tpu_custom_call.1} parent=11 // pred_fallthru
          _
        // Predicated region
        $region29: #{tpu_custom_call.1} parent=11 // pred_check
          %p397 = pneg %p155
        $region30: #{tpu_custom_call.1} parent=11 // pred_check_branch
          %399 = sbr.rel (%p397) target = $region32
        $region31: #{tpu_custom_call.1} parent=11 // pred_region
          _
        $region32: #{tpu_custom_call.1} parent=11 // pred_fallthru
          _
        // Predicated region
        $region33: #{tpu_custom_call.1} parent=11 // pred_check
          %p400 = pneg %p176
        $region34: #{tpu_custom_call.1} parent=11 // pred_check_branch
          %402 = sbr.rel (%p400) target = $region36
        $region35: #{tpu_custom_call.1} parent=11 // pred_region
          _
        $region36: #{tpu_custom_call.1} parent=11 // pred_fallthru
          _
        // Predicated region
        $region37: #{tpu_custom_call.1} parent=11 // pred_check
          %p403 = pneg %p197
        $region38: #{tpu_custom_call.1} parent=11 // pred_check_branch
          %405 = sbr.rel (%p403) target = $region40
        $region39: #{tpu_custom_call.1} parent=11 // pred_region
          _
        $region40: #{tpu_custom_call.1} parent=11 // pred_fallthru
          _
        // Predicated region
        $region41: #{tpu_custom_call.1} parent=11 // pred_check
          %p406 = pneg %p218
        $region42: #{tpu_custom_call.1} parent=11 // pred_check_branch
          %408 = sbr.rel (%p406) target = $region44
        $region43: #{tpu_custom_call.1} parent=11 // pred_region
          _
        $region44: #{tpu_custom_call.1} parent=11 // pred_fallthru
          _
        // Predicated region
        $region45: #{tpu_custom_call.1} parent=11 // pred_check
          %p409 = pneg %p239
        $region46: #{tpu_custom_call.1} parent=11 // pred_check_branch
          %411 = sbr.rel (%p409) target = $region48
        $region47: #{tpu_custom_call.1} parent=11 // pred_region
          _
        $region48: #{tpu_custom_call.1} parent=11 // pred_fallthru
          _
        // Predicated region
        $region49: #{tpu_custom_call.1} parent=11 // pred_check
          %p412 = pneg %p260
        $region50: #{tpu_custom_call.1} parent=11 // pred_check_branch
          %414 = sbr.rel (%p412) target = $region52
        $region51: #{tpu_custom_call.1} parent=11 // pred_region
          _
        $region52: #{tpu_custom_call.1} parent=11 // pred_fallthru
          _
        // Predicated region
        $region53: #{tpu_custom_call.1} parent=11 // pred_check
          %p415 = pneg %p281
        $region54: #{tpu_custom_call.1} parent=11 // pred_check_branch
          %417 = sbr.rel (%p415) target = $region56
        $region55: #{tpu_custom_call.1} parent=11 // pred_region
          _
        $region56: #{tpu_custom_call.1} parent=11 // pred_fallthru
          _
        // Predicated region
        $region57: #{tpu_custom_call.1} parent=11 // pred_check
          %p418 = pneg %p302
        $region58: #{tpu_custom_call.1} parent=11 // pred_check_branch
          %420 = sbr.rel (%p418) target = $region60
        $region59: #{tpu_custom_call.1} parent=11 // pred_region
          _
        $region60: #{tpu_custom_call.1} parent=11 // pred_fallthru
          _
        // Predicated region
        $region61: #{tpu_custom_call.1} parent=11 // pred_check
          %p421 = pneg %p323
        $region62: #{tpu_custom_call.1} parent=11 // pred_check_branch
          %423 = sbr.rel (%p421) target = $region64
        $region63: #{tpu_custom_call.1} parent=11 // pred_region
          _
        $region64: #{tpu_custom_call.1} parent=11 // pred_fallthru
          _
        // Predicated region
        $region65: #{tpu_custom_call.1} parent=11 // pred_check
          %p424 = pneg %p344
        $region66: #{tpu_custom_call.1} parent=11 // pred_check_branch
          %426 = sbr.rel (%p424) target = $region68
        $region67: #{tpu_custom_call.1} parent=11 // pred_region
          _
        $region68: #{tpu_custom_call.1} parent=11 // pred_fallthru
          _
      $region12: #{tpu_custom_call.1} parent=5 // pred_fallthru
        _
      %p427 = scmp.lt.s32.totalorder %s24, 2
      // Predicated region
      $region69: #{tpu_custom_call.1} parent=5 // pred_check
        %p428 = pneg %p427
      $region70: #{tpu_custom_call.1} parent=5 // pred_check_branch
        %430 = sbr.rel (%p428) target = $region72
      $region71: #{tpu_custom_call.1} parent=5 // pred_region
        // Predicated region
        $region73: #{tpu_custom_call.1} parent=71 // pred_check
          %p431 = pneg %p44
        $region74: #{tpu_custom_call.1} parent=71 // pred_check_branch
          %433 = sbr.rel (%p431) target = $region76
        $region75: #{tpu_custom_call.1} parent=71 // pred_region
          %p434 = scmp.lt.s32.totalorder %s24, 1
          %s435 = scalar_select %p434, %s24, 1
          %s436 = smul.addr %s435, 8
          %s437 = scalar_lea.vmem %s0, %s436
        $region76: #{tpu_custom_call.1} parent=71 // pred_fallthru
          _
      $region72: #{tpu_custom_call.1} parent=5 // pred_fallthru
        _
      %p438 = scmp.le.s32.totalorder 1, %s24
      %p439 = scmp.lt.s32.totalorder %s24, 3
      %p440 = pnand %p438, %p439
      %p441 = pneg %p440
      // Predicated region
      $region77: #{tpu_custom_call.1} parent=5 // pred_check
        _
      $region78: #{tpu_custom_call.1} parent=5 // pred_check_branch
        %443 = sbr.rel (%p440) target = $region80
      $region79: #{tpu_custom_call.1} parent=5 // pred_region
        %s444 = ssub.s32 %s24, 1
        %p445 = scmp.lt.s32.totalorder %s29, 1
        %s446 = scalar_select %p445, %s29, 1
        %s447 = smul.addr %s446, 8
        %s448 = scalar_lea.vmem %s0, %s447
        %p449 = pneg %p50
        %p450 = pneg %p47
        %p451 = pneg %p71
        %p452 = pneg %p68
        %p453 = pneg %p92
        %p454 = pneg %p89
        %p455 = pneg %p113
        %p456 = pneg %p110
        %p457 = pneg %p134
        %p458 = pneg %p131
        %p459 = pneg %p155
        %p460 = pneg %p152
        %p461 = pneg %p176
        %p462 = pneg %p173
        %p463 = pneg %p197
        %p464 = pneg %p194
        %p465 = pneg %p218
        %p466 = pneg %p215
        %p467 = pneg %p239
        %p468 = pneg %p236
        %p469 = pneg %p260
        %p470 = pneg %p257
        %p471 = pneg %p281
        %p472 = pneg %p278
        %p473 = pneg %p302
        %p474 = pneg %p299
        %p475 = pneg %p323
        %p476 = pneg %p320
        %p477 = pneg %p344
        %p478 = pneg %p341
        %p479 = pneg %p370
        %p480 = pneg %p367
        %s481 = sand.u32 %s357, 1
        %s482 = scalar_lea.sflag [#allocation3], %s481
        %s483 = sand.u32 %s357, 1
        %s484 = smul.addr %s483, 8
        %s485 = scalar_lea.vmem [#allocation2], %s484
        %p486 = scmp.lt.s32.totalorder %s29, 1
        %s487 = scalar_select %p486, %s29, 1
        %s488 = smul.addr %s487, 8
        %s489 = scalar_lea.vmem %s0, %s488
        %v490 = vld [vmem:[%s489] sm:$0xff]
        %v491 = vmul.f32 %v490, %v490
        %vm492 = vcmask 261120
        %v493 = vsel %vm492, %v491, 0.0
        %494 = vadd.xlane.f32.xlu0 %v493
        %v495 = vpop.xlane.xlu0 %494
        %v496 = vrcp.pop 32.0
        %v497 = vmul.f32 %v495, %v496
        %v498 = vld [vmem:[%s1] sm:$0x1]
        %v499 = vadd.f32 %v497, 1e-05
        %v500 = vrsqrt.pop %v499
        %v501 = vmul.f32 %v490, %v500
        %v503 = vlaneseq
        %v504 = vshrl.u32 %v503, 7
        %v505 = vsub.s32 0, %v504
        %v506 = vrot.slane %v498, %v505
        %v508 = vmul.f32 %v506, %v501
        %v509 = vld [vmem:[%s2] sm:$0x1]
        %v511 = vlaneseq
        %v512 = vshrl.u32 %v511, 7
        %v513 = vsub.s32 0, %v512
        %v514 = vrot.slane %v509, %v513
        %v516 = vadd.f32 %v508, %v514
        %v517 = vld [vmem:[%s3] sm:$0xff]
        %v518 = vld [vmem:[%s3 + $0x8] sm:$0xff]
        %v519 = vld [vmem:[%s3 + $0x10] sm:$0xff]
        %v520 = vld [vmem:[%s3 + $0x18] sm:$0xff]
        %v521 = vld [vmem:[%s3 + $0x20] sm:$0xff]
        %v522 = vld [vmem:[%s3 + $0x28] sm:$0xff]
        %v523 = vld [vmem:[%s3 + $0x30] sm:$0xff]
        %v524 = vld [vmem:[%s3 + $0x38] sm:$0xff]
        %v525 = vld [vmem:[%s4] sm:$0x3]
        %v527 = vlaneseq
        %v528 = vshrl.u32 %v527, 7
        %v529 = vsub.s32 0, %v528
        %v530 = vrot.slane %v525, %v529
        %v531 = vlaneseq
        %v532 = vshrl.u32 %v531, 7
        %v533 = vsub.s32 1, %v532
        %v534 = vrot.slane %v525, %v533
        %v538 = vsel %vm492, %v516, 0
        %540 = vmatprep.subr.mxu0 %v518
        %541 = vmatpush1.msra.mxu0 %v517
        %542 = vmatprep.subr.mxu0 %v520
        %543 = vmatpush1.msra.mxu0 %v519
        %544 = vmatprep.subr.mxu0 %v522
        %545 = vmatpush1.msra.mxu0 %v521
        %546 = vmatprep.subr.mxu0 %v524
        %547 = vmatpush1.msra.mxu0 %v523
        %548 = vmatprep.subr.mxu0 0.0
        %549 = vmatpush1.msra.mxu0 0.0
        %550 = vmatprep.subr.mxu0 0.0
        %551 = vmatpush1.msra.mxu0 0.0
        %552 = vmatprep.subr.mxu0 0.0
        %553 = vmatpush1.msra.mxu0 0.0
        %554 = vmatprep.subr.mxu0 0.0
        %555 = vmatpush1.msra.mxu0 0.0
        %556 = vmatprep.subr.mxu0 0.0
        %557 = vmatpush1.msra.mxu0 0.0
        %558 = vmatprep.subr.mxu0 0.0
        %559 = vmatpush1.msra.mxu0 0.0
        %560 = vmatprep.subr.mxu0 0.0
        %561 = vmatpush1.msra.mxu0 0.0
        %562 = vmatprep.subr.mxu0 0.0
        %563 = vmatpush1.msra.mxu0 0.0
        %564 = vmatprep.subr.mxu0 0.0
        %565 = vmatpush1.msra.mxu0 0.0
        %566 = vmatprep.subr.mxu0 0.0
        %567 = vmatpush1.msra.mxu0 0.0
        %568 = vmatprep.subr.mxu0 0.0
        %569 = vmatpush1.msra.mxu0 0.0
        %570 = vmatprep.subr.mxu0 0.0
        %571 = vmatpush1.msra.mxu0 0.0
        %572 = vmatprep.subr.mxu0 0.0
        %573 = vmatpush1.msra.mxu0 0.0
        %574 = vmatprep.subr.mxu0 0.0
        %575 = vmatpush1.msra.mxu0 0.0
        %576 = vmatprep.subr.mxu0 0.0
        %577 = vmatpush1.msra.mxu0 0.0
        %578 = vmatprep.subr.mxu0 0.0
        %579 = vmatpush1.msra.mxu0 0.0
        %580 = vmatprep.subr.mxu0 0.0
        %581 = vmatpush1.msra.mxu0 0.0
        %582 = vmatprep.subr.mxu0 0.0
        %583 = vmatpush1.msra.mxu0 0.0
        %584 = vmatprep.subr.mxu0 0.0
        %585 = vmatpush1.msra.mxu0 0.0
        %586 = vmatprep.subr.mxu0 0.0
        %587 = vmatpush1.msra.mxu0 0.0
        %588 = vmatprep.subr.mxu0 0.0
        %589 = vmatpush1.msra.mxu0 0.0
        %590 = vmatprep.subr.mxu0 0.0
        %591 = vmatpush1.msra.mxu0 0.0
        %592 = vmatprep.subr.mxu0 0.0
        %593 = vmatpush1.msra.mxu0 0.0
        %594 = vmatprep.subr.mxu0 0.0
        %595 = vmatpush1.msra.mxu0 0.0
        %596 = vmatprep.subr.mxu0 0.0
        %597 = vmatpush1.msra.mxu0 0.0
        %598 = vmatprep.subr.mxu0 0.0
        %599 = vmatpush1.msra.mxu0 0.0
        %600 = vmatprep.subr.mxu0 0.0
        %601 = vmatpush1.msra.mxu0 0.0
        %602 = vmatprep.subr.mxu0 0.0
        %603 = vmatpush1.msra.mxu0 0.0
        %604 = vmatprep.mubr.f32.mxu0 0.0
        %605 = vmatmul.mubr.f32.gmra.mrb[0].mxu0 %v538
        %v606 = vpop.f32.mrb[0].mxu0
        %v607 = vadd.f32 %v530, %v606
        %v608 = vpop.f32.mrb[0].mxu0
        %v609 = vadd.f32 %v534, %v608
        %610 = vdwg.mxu0
        %v611 = vld [vmem:[%s5] sm:$0xff]
        %v612 = vld [vmem:[%s6] sm:$0xff]
        %v613 = vmul.f32 %v607, %v611
        %615 = vrot.lane.b32.xlu0 %v612, 96
        %v616 = vpop.permute.xlu0 %615
        %v618 = vmul.f32 %v607, %v616
        %620 = vrot.lane.b32.xlu0 %v618, 32
        %v621 = vpop.permute.xlu0 %620
        %v623 = vadd.f32 %v613, %v621
        %625 = vrot.lane.b32.xlu0 %v611, 32
        %v626 = vpop.permute.xlu0 %625
        %v628 = vmul.f32 %v607, %v626
        %v629 = vmul.f32 %v609, %v612
        %631 = vrot.lane.b32.xlu0 %v629, 32
        %v632 = vpop.permute.xlu0 %631
        %v634 = vadd.f32 %v628, %v632
        %v635 = vlaneseq
        %v636 = vshrl.u32 %v635, 7
        %v637 = vlaneseq
        %v638 = vand.u32 %v637, 127
        %vm639 = vcmp.ge.s32.totalorder %v636, %v638
        %v640 = vsel %vm639, 0.0, -1e+30
        %642 = vrot.lane.b32.xlu0 %v634, 96
        %v643 = vpop.permute.xlu0 %642
        %vm644 = vcmask 64512
        %v646 = vsel %vm644, %v623, 0
        %v648 = vsel %vm644, %v643, 0
        %650 = vmatprep.subr.mxu0 0.0
        %651 = vmatpush1.xpose.msra.mxu0 %v648
        %652 = vmatprep.subr.mxu0 0.0
        %653 = vmatpush1.xpose.msra.mxu0 0.0
        %654 = vmatprep.subr.mxu0 0.0
        %655 = vmatpush1.xpose.msra.mxu0 0.0
        %656 = vmatprep.subr.mxu0 0.0
        %657 = vmatpush1.xpose.msra.mxu0 0.0
        %658 = vmatprep.subr.mxu0 0.0
        %659 = vmatpush1.xpose.msra.mxu0 0.0
        %660 = vmatprep.subr.mxu0 0.0
        %661 = vmatpush1.xpose.msra.mxu0 0.0
        %662 = vmatprep.subr.mxu0 0.0
        %663 = vmatpush1.xpose.msra.mxu0 0.0
        %664 = vmatprep.subr.mxu0 0.0
        %665 = vmatpush1.xpose.msra.mxu0 0.0
        %666 = vmatprep.subr.mxu0 0.0
        %667 = vmatpush1.xpose.msra.mxu0 0.0
        %668 = vmatprep.subr.mxu0 0.0
        %669 = vmatpush1.xpose.msra.mxu0 0.0
        %670 = vmatprep.subr.mxu0 0.0
        %671 = vmatpush1.xpose.msra.mxu0 0.0
        %672 = vmatprep.subr.mxu0 0.0
        %673 = vmatpush1.xpose.msra.mxu0 0.0
        %674 = vmatprep.subr.mxu0 0.0
        %675 = vmatpush1.xpose.msra.mxu0 0.0
        %676 = vmatprep.subr.mxu0 0.0
        %677 = vmatpush1.xpose.msra.mxu0 0.0
        %678 = vmatprep.subr.mxu0 0.0
        %679 = vmatpush1.xpose.msra.mxu0 0.0
        %680 = vmatprep.subr.mxu0 0.0
        %681 = vmatpush1.xpose.msra.mxu0 0.0
        %682 = vmatprep.subr.mxu0 0.0
        %683 = vmatpush1.xpose.msra.mxu0 0.0
        %684 = vmatprep.subr.mxu0 0.0
        %685 = vmatpush1.xpose.msra.mxu0 0.0
        %686 = vmatprep.subr.mxu0 0.0
        %687 = vmatpush1.xpose.msra.mxu0 0.0
        %688 = vmatprep.subr.mxu0 0.0
        %689 = vmatpush1.xpose.msra.mxu0 0.0
        %690 = vmatprep.subr.mxu0 0.0
        %691 = vmatpush1.xpose.msra.mxu0 0.0
        %692 = vmatprep.subr.mxu0 0.0
        %693 = vmatpush1.xpose.msra.mxu0 0.0
        %694 = vmatprep.subr.mxu0 0.0
        %695 = vmatpush1.xpose.msra.mxu0 0.0
        %696 = vmatprep.subr.mxu0 0.0
        %697 = vmatpush1.xpose.msra.mxu0 0.0
        %698 = vmatprep.subr.mxu0 0.0
        %699 = vmatpush1.xpose.msra.mxu0 0.0
        %700 = vmatprep.subr.mxu0 0.0
        %701 = vmatpush1.xpose.msra.mxu0 0.0
        %702 = vmatprep.subr.mxu0 0.0
        %703 = vmatpush1.xpose.msra.mxu0 0.0
        %704 = vmatprep.subr.mxu0 0.0
        %705 = vmatpush1.xpose.msra.mxu0 0.0
        %706 = vmatprep.subr.mxu0 0.0
        %707 = vmatpush1.xpose.msra.mxu0 0.0
        %708 = vmatprep.subr.mxu0 0.0
        %709 = vmatpush1.xpose.msra.mxu0 0.0
        %710 = vmatprep.subr.mxu0 0.0
        %711 = vmatpush1.xpose.msra.mxu0 0.0
        %712 = vmatprep.subr.mxu0 0.0
        %713 = vmatpush1.xpose.msra.mxu0 0.0
        %714 = vmatprep.mubr.f32.mxu0 0.0
        %715 = vmatmul.mubr.f32.gmra.mrb[0].mxu0 %v646
        %v716 = vpop.f32.mrb[0].mxu0
        %v717 = vadd.f32 0.0, %v716
        %v718 = vpop.f32.mrb[0].mxu0
        %719 = vdwg.mxu0
        %v720 = vmul.f32 %v717, 0.35355338
        %v721 = vadd.f32 %v720, %v640
        %722 = vrot.lane.b32.xlu0 %v623, 120
        %v723 = vpop.permute.xlu0 %722
        %724 = vrot.lane.b32.xlu0 %v634, 88
        %v725 = vpop.permute.xlu0 %724
        %v726 = vsel %vm644, %v723, 0
        %v728 = vsel %vm644, %v725, 0
        %730 = vmatprep.subr.mxu0 0.0
        %731 = vmatpush1.xpose.msra.mxu0 %v728
        %732 = vmatprep.subr.mxu0 0.0
        %733 = vmatpush1.xpose.msra.mxu0 0.0
        %734 = vmatprep.subr.mxu0 0.0
        %735 = vmatpush1.xpose.msra.mxu0 0.0
        %736 = vmatprep.subr.mxu0 0.0
        %737 = vmatpush1.xpose.msra.mxu0 0.0
        %738 = vmatprep.subr.mxu0 0.0
        %739 = vmatpush1.xpose.msra.mxu0 0.0
        %740 = vmatprep.subr.mxu0 0.0
        %741 = vmatpush1.xpose.msra.mxu0 0.0
        %742 = vmatprep.subr.mxu0 0.0
        %743 = vmatpush1.xpose.msra.mxu0 0.0
        %744 = vmatprep.subr.mxu0 0.0
        %745 = vmatpush1.xpose.msra.mxu0 0.0
        %746 = vmatprep.subr.mxu0 0.0
        %747 = vmatpush1.xpose.msra.mxu0 0.0
        %748 = vmatprep.subr.mxu0 0.0
        %749 = vmatpush1.xpose.msra.mxu0 0.0
        %750 = vmatprep.subr.mxu0 0.0
        %751 = vmatpush1.xpose.msra.mxu0 0.0
        %752 = vmatprep.subr.mxu0 0.0
        %753 = vmatpush1.xpose.msra.mxu0 0.0
        %754 = vmatprep.subr.mxu0 0.0
        %755 = vmatpush1.xpose.msra.mxu0 0.0
        %756 = vmatprep.subr.mxu0 0.0
        %757 = vmatpush1.xpose.msra.mxu0 0.0
        %758 = vmatprep.subr.mxu0 0.0
        %759 = vmatpush1.xpose.msra.mxu0 0.0
        %760 = vmatprep.subr.mxu0 0.0
        %761 = vmatpush1.xpose.msra.mxu0 0.0
        %762 = vmatprep.subr.mxu0 0.0
        %763 = vmatpush1.xpose.msra.mxu0 0.0
        %764 = vmatprep.subr.mxu0 0.0
        %765 = vmatpush1.xpose.msra.mxu0 0.0
        %766 = vmatprep.subr.mxu0 0.0
        %767 = vmatpush1.xpose.msra.mxu0 0.0
        %768 = vmatprep.subr.mxu0 0.0
        %769 = vmatpush1.xpose.msra.mxu0 0.0
        %770 = vmatprep.subr.mxu0 0.0
        %771 = vmatpush1.xpose.msra.mxu0 0.0
        %772 = vmatprep.subr.mxu0 0.0
        %773 = vmatpush1.xpose.msra.mxu0 0.0
        %774 = vmatprep.subr.mxu0 0.0
        %775 = vmatpush1.xpose.msra.mxu0 0.0
        %776 = vmatprep.subr.mxu0 0.0
        %777 = vmatpush1.xpose.msra.mxu0 0.0
        %778 = vmatprep.subr.mxu0 0.0
        %779 = vmatpush1.xpose.msra.mxu0 0.0
        %780 = vmatprep.subr.mxu0 0.0
        %781 = vmatpush1.xpose.msra.mxu0 0.0
        %782 = vmatprep.subr.mxu0 0.0
        %783 = vmatpush1.xpose.msra.mxu0 0.0
        %784 = vmatprep.subr.mxu0 0.0
        %785 = vmatpush1.xpose.msra.mxu0 0.0
        %786 = vmatprep.subr.mxu0 0.0
        %787 = vmatpush1.xpose.msra.mxu0 0.0
        %788 = vmatprep.subr.mxu0 0.0
        %789 = vmatpush1.xpose.msra.mxu0 0.0
        %790 = vmatprep.subr.mxu0 0.0
        %791 = vmatpush1.xpose.msra.mxu0 0.0
        %792 = vmatprep.subr.mxu0 0.0
        %793 = vmatpush1.xpose.msra.mxu0 0.0
        %794 = vmatprep.mubr.f32.mxu0 0.0
        %795 = vmatmul.mubr.f32.gmra.mrb[0].mxu0 %v726
        %v796 = vpop.f32.mrb[0].mxu0
        %v797 = vadd.f32 0.0, %v796
        %v798 = vpop.f32.mrb[0].mxu0
        %799 = vdwg.mxu0
        %v800 = vmul.f32 %v797, 0.35355338
        %v801 = vadd.f32 %v800, %v640
        %802 = vrot.lane.b32.xlu0 %v623, 112
        %v803 = vpop.permute.xlu0 %802
        %804 = vrot.lane.b32.xlu0 %v634, 80
        %v805 = vpop.permute.xlu0 %804
        %v806 = vsel %vm644, %v803, 0
        %v808 = vsel %vm644, %v805, 0
        %810 = vmatprep.subr.mxu0 0.0
        %811 = vmatpush1.xpose.msra.mxu0 %v808
        %812 = vmatprep.subr.mxu0 0.0
        %813 = vmatpush1.xpose.msra.mxu0 0.0
        %814 = vmatprep.subr.mxu0 0.0
        %815 = vmatpush1.xpose.msra.mxu0 0.0
        %816 = vmatprep.subr.mxu0 0.0
        %817 = vmatpush1.xpose.msra.mxu0 0.0
        %818 = vmatprep.subr.mxu0 0.0
        %819 = vmatpush1.xpose.msra.mxu0 0.0
        %820 = vmatprep.subr.mxu0 0.0
        %821 = vmatpush1.xpose.msra.mxu0 0.0
        %822 = vmatprep.subr.mxu0 0.0
        %823 = vmatpush1.xpose.msra.mxu0 0.0
        %824 = vmatprep.subr.mxu0 0.0
        %825 = vmatpush1.xpose.msra.mxu0 0.0
        %826 = vmatprep.subr.mxu0 0.0
        %827 = vmatpush1.xpose.msra.mxu0 0.0
        %828 = vmatprep.subr.mxu0 0.0
        %829 = vmatpush1.xpose.msra.mxu0 0.0
        %830 = vmatprep.subr.mxu0 0.0
        %831 = vmatpush1.xpose.msra.mxu0 0.0
        %832 = vmatprep.subr.mxu0 0.0
        %833 = vmatpush1.xpose.msra.mxu0 0.0
        %834 = vmatprep.subr.mxu0 0.0
        %835 = vmatpush1.xpose.msra.mxu0 0.0
        %836 = vmatprep.subr.mxu0 0.0
        %837 = vmatpush1.xpose.msra.mxu0 0.0
        %838 = vmatprep.subr.mxu0 0.0
        %839 = vmatpush1.xpose.msra.mxu0 0.0
        %840 = vmatprep.subr.mxu0 0.0
        %841 = vmatpush1.xpose.msra.mxu0 0.0
        %842 = vmatprep.subr.mxu0 0.0
        %843 = vmatpush1.xpose.msra.mxu0 0.0
        %844 = vmatprep.subr.mxu0 0.0
        %845 = vmatpush1.xpose.msra.mxu0 0.0
        %846 = vmatprep.subr.mxu0 0.0
        %847 = vmatpush1.xpose.msra.mxu0 0.0
        %848 = vmatprep.subr.mxu0 0.0
        %849 = vmatpush1.xpose.msra.mxu0 0.0
        %850 = vmatprep.subr.mxu0 0.0
        %851 = vmatpush1.xpose.msra.mxu0 0.0
        %852 = vmatprep.subr.mxu0 0.0
        %853 = vmatpush1.xpose.msra.mxu0 0.0
        %854 = vmatprep.subr.mxu0 0.0
        %855 = vmatpush1.xpose.msra.mxu0 0.0
        %856 = vmatprep.subr.mxu0 0.0
        %857 = vmatpush1.xpose.msra.mxu0 0.0
        %858 = vmatprep.subr.mxu0 0.0
        %859 = vmatpush1.xpose.msra.mxu0 0.0
        %860 = vmatprep.subr.mxu0 0.0
        %861 = vmatpush1.xpose.msra.mxu0 0.0
        %862 = vmatprep.subr.mxu0 0.0
        %863 = vmatpush1.xpose.msra.mxu0 0.0
        %864 = vmatprep.subr.mxu0 0.0
        %865 = vmatpush1.xpose.msra.mxu0 0.0
        %866 = vmatprep.subr.mxu0 0.0
        %867 = vmatpush1.xpose.msra.mxu0 0.0
        %868 = vmatprep.subr.mxu0 0.0
        %869 = vmatpush1.xpose.msra.mxu0 0.0
        %870 = vmatprep.subr.mxu0 0.0
        %871 = vmatpush1.xpose.msra.mxu0 0.0
        %872 = vmatprep.subr.mxu0 0.0
        %873 = vmatpush1.xpose.msra.mxu0 0.0
        %874 = vmatprep.mubr.f32.mxu0 0.0
        %875 = vmatmul.mubr.f32.gmra.mrb[0].mxu0 %v806
        %v876 = vpop.f32.mrb[0].mxu0
        %v877 = vadd.f32 0.0, %v876
        %v878 = vpop.f32.mrb[0].mxu0
        %879 = vdwg.mxu0
        %v880 = vmul.f32 %v877, 0.35355338
        %v881 = vadd.f32 %v880, %v640
        %882 = vrot.lane.b32.xlu0 %v623, 104
        %v883 = vpop.permute.xlu0 %882
        %884 = vrot.lane.b32.xlu0 %v634, 72
        %v885 = vpop.permute.xlu0 %884
        %v886 = vsel %vm644, %v883, 0
        %v888 = vsel %vm644, %v885, 0
        %890 = vmatprep.subr.mxu0 0.0
        %891 = vmatpush1.xpose.msra.mxu0 %v888
        %892 = vmatprep.subr.mxu0 0.0
        %893 = vmatpush1.xpose.msra.mxu0 0.0
        %894 = vmatprep.subr.mxu0 0.0
        %895 = vmatpush1.xpose.msra.mxu0 0.0
        %896 = vmatprep.subr.mxu0 0.0
        %897 = vmatpush1.xpose.msra.mxu0 0.0
        %898 = vmatprep.subr.mxu0 0.0
        %899 = vmatpush1.xpose.msra.mxu0 0.0
        %900 = vmatprep.subr.mxu0 0.0
        %901 = vmatpush1.xpose.msra.mxu0 0.0
        %902 = vmatprep.subr.mxu0 0.0
        %903 = vmatpush1.xpose.msra.mxu0 0.0
        %904 = vmatprep.subr.mxu0 0.0
        %905 = vmatpush1.xpose.msra.mxu0 0.0
        %906 = vmatprep.subr.mxu0 0.0
        %907 = vmatpush1.xpose.msra.mxu0 0.0
        %908 = vmatprep.subr.mxu0 0.0
        %909 = vmatpush1.xpose.msra.mxu0 0.0
        %910 = vmatprep.subr.mxu0 0.0
        %911 = vmatpush1.xpose.msra.mxu0 0.0
        %912 = vmatprep.subr.mxu0 0.0
        %913 = vmatpush1.xpose.msra.mxu0 0.0
        %914 = vmatprep.subr.mxu0 0.0
        %915 = vmatpush1.xpose.msra.mxu0 0.0
        %916 = vmatprep.subr.mxu0 0.0
        %917 = vmatpush1.xpose.msra.mxu0 0.0
        %918 = vmatprep.subr.mxu0 0.0
        %919 = vmatpush1.xpose.msra.mxu0 0.0
        %920 = vmatprep.subr.mxu0 0.0
        %921 = vmatpush1.xpose.msra.mxu0 0.0
        %922 = vmatprep.subr.mxu0 0.0
        %923 = vmatpush1.xpose.msra.mxu0 0.0
        %924 = vmatprep.subr.mxu0 0.0
        %925 = vmatpush1.xpose.msra.mxu0 0.0
        %926 = vmatprep.subr.mxu0 0.0
        %927 = vmatpush1.xpose.msra.mxu0 0.0
        %928 = vmatprep.subr.mxu0 0.0
        %929 = vmatpush1.xpose.msra.mxu0 0.0
        %930 = vmatprep.subr.mxu0 0.0
        %931 = vmatpush1.xpose.msra.mxu0 0.0
        %932 = vmatprep.subr.mxu0 0.0
        %933 = vmatpush1.xpose.msra.mxu0 0.0
        %934 = vmatprep.subr.mxu0 0.0
        %935 = vmatpush1.xpose.msra.mxu0 0.0
        %936 = vmatprep.subr.mxu0 0.0
        %937 = vmatpush1.xpose.msra.mxu0 0.0
        %938 = vmatprep.subr.mxu0 0.0
        %939 = vmatpush1.xpose.msra.mxu0 0.0
        %940 = vmatprep.subr.mxu0 0.0
        %941 = vmatpush1.xpose.msra.mxu0 0.0
        %942 = vmatprep.subr.mxu0 0.0
        %943 = vmatpush1.xpose.msra.mxu0 0.0
        %944 = vmatprep.subr.mxu0 0.0
        %945 = vmatpush1.xpose.msra.mxu0 0.0
        %946 = vmatprep.subr.mxu0 0.0
        %947 = vmatpush1.xpose.msra.mxu0 0.0
        %948 = vmatprep.subr.mxu0 0.0
        %949 = vmatpush1.xpose.msra.mxu0 0.0
        %950 = vmatprep.subr.mxu0 0.0
        %951 = vmatpush1.xpose.msra.mxu0 0.0
        %952 = vmatprep.subr.mxu0 0.0
        %953 = vmatpush1.xpose.msra.mxu0 0.0
        %954 = vmatprep.mubr.f32.mxu0 0.0
        %955 = vmatmul.mubr.f32.gmra.mrb[0].mxu0 %v886
        %v956 = vpop.f32.mrb[0].mxu0
        %v957 = vadd.f32 0.0, %v956
        %v958 = vpop.f32.mrb[0].mxu0
        %959 = vdwg.mxu0
        %v960 = vmul.f32 %v957, 0.35355338
        %v961 = vadd.f32 %v960, %v640
        %v962 = vsel %vm644, %v721, -inf
        %963 = vmax.xlane.f32.xlu0 %v962
        %v964 = vpop.xlane.xlu0 %963
        %v965 = vsel %vm644, %v801, -inf
        %966 = vmax.xlane.f32.xlu0 %v965
        %v967 = vpop.xlane.xlu0 %966
        %v968 = vsel %vm644, %v881, -inf
        %969 = vmax.xlane.f32.xlu0 %v968
        %v970 = vpop.xlane.xlu0 %969
        %v971 = vsel %vm644, %v961, -inf
        %972 = vmax.xlane.f32.xlu0 %v971
        %v973 = vpop.xlane.xlu0 %972
        %v974 = vsub.f32 %v721, %v964
        %v975 = vsub.f32 %v801, %v967
        %v976 = vsub.f32 %v881, %v970
        %v977 = vsub.f32 %v961, %v973
        %v978 = vmul.f32 %v974, 1.442695
        %v979 = vpow.pop %v978
        %v980 = vmul.f32 %v975, 1.442695
        %v981 = vpow.pop %v980
        %v982 = vmul.f32 %v976, 1.442695
        %v983 = vpow.pop %v982
        %v984 = vmul.f32 %v977, 1.442695
        %v985 = vpow.pop %v984
        %v986 = vsel %vm644, %v979, 0.0
        %987 = vadd.xlane.f32.xlu0 %v986
        %v988 = vpop.xlane.xlu0 %987
        %v989 = vsel %vm644, %v981, 0.0
        %990 = vadd.xlane.f32.xlu0 %v989
        %v991 = vpop.xlane.xlu0 %990
        %v992 = vsel %vm644, %v983, 0.0
        %993 = vadd.xlane.f32.xlu0 %v992
        %v994 = vpop.xlane.xlu0 %993
        %v995 = vsel %vm644, %v985, 0.0
        %996 = vadd.xlane.f32.xlu0 %v995
        %v997 = vpop.xlane.xlu0 %996
        %v998 = vrcp.pop %v988
        %v999 = vrcp.pop %v991
        %v1000 = vrcp.pop %v994
        %v1001 = vrcp.pop %v997
        %v1002 = vmul.f32 %v979, %v998
        %v1003 = vmul.f32 %v981, %v999
        %v1004 = vmul.f32 %v983, %v1000
        %v1005 = vmul.f32 %v985, %v1001
        %v1006 = vld [vmem:[%s7] sm:$0xff]
        %v1007 = vld [vmem:[%s7 + $0x8] sm:$0xff]
        %v1008 = vld [vmem:[%s7 + $0x10] sm:$0xff]
        %v1009 = vld [vmem:[%s7 + $0x18] sm:$0xff]
        %1011 = vrot.lane.b32.xlu0 %v607, 64
        %v1012 = vpop.permute.xlu0 %1011
        %v1015 = vsel %vm644, %v1002, 0
        %1017 = vmatprep.subr.mxu0 0.0
        %1018 = vmatpush1.msra.mxu0 %v1012
        %1019 = vmatprep.subr.mxu0 0.0
        %1020 = vmatpush1.msra.mxu0 0.0
        %1021 = vmatprep.subr.mxu0 0.0
        %1022 = vmatpush1.msra.mxu0 0.0
        %1023 = vmatprep.subr.mxu0 0.0
        %1024 = vmatpush1.msra.mxu0 0.0
        %1025 = vmatprep.subr.mxu0 0.0
        %1026 = vmatpush1.msra.mxu0 0.0
        %1027 = vmatprep.subr.mxu0 0.0
        %1028 = vmatpush1.msra.mxu0 0.0
        %1029 = vmatprep.subr.mxu0 0.0
        %1030 = vmatpush1.msra.mxu0 0.0
        %1031 = vmatprep.subr.mxu0 0.0
        %1032 = vmatpush1.msra.mxu0 0.0
        %1033 = vmatprep.subr.mxu0 0.0
        %1034 = vmatpush1.msra.mxu0 0.0
        %1035 = vmatprep.subr.mxu0 0.0
        %1036 = vmatpush1.msra.mxu0 0.0
        %1037 = vmatprep.subr.mxu0 0.0
        %1038 = vmatpush1.msra.mxu0 0.0
        %1039 = vmatprep.subr.mxu0 0.0
        %1040 = vmatpush1.msra.mxu0 0.0
        %1041 = vmatprep.subr.mxu0 0.0
        %1042 = vmatpush1.msra.mxu0 0.0
        %1043 = vmatprep.subr.mxu0 0.0
        %1044 = vmatpush1.msra.mxu0 0.0
        %1045 = vmatprep.subr.mxu0 0.0
        %1046 = vmatpush1.msra.mxu0 0.0
        %1047 = vmatprep.subr.mxu0 0.0
        %1048 = vmatpush1.msra.mxu0 0.0
        %1049 = vmatprep.subr.mxu0 0.0
        %1050 = vmatpush1.msra.mxu0 0.0
        %1051 = vmatprep.subr.mxu0 0.0
        %1052 = vmatpush1.msra.mxu0 0.0
        %1053 = vmatprep.subr.mxu0 0.0
        %1054 = vmatpush1.msra.mxu0 0.0
        %1055 = vmatprep.subr.mxu0 0.0
        %1056 = vmatpush1.msra.mxu0 0.0
        %1057 = vmatprep.subr.mxu0 0.0
        %1058 = vmatpush1.msra.mxu0 0.0
        %1059 = vmatprep.subr.mxu0 0.0
        %1060 = vmatpush1.msra.mxu0 0.0
        %1061 = vmatprep.subr.mxu0 0.0
        %1062 = vmatpush1.msra.mxu0 0.0
        %1063 = vmatprep.subr.mxu0 0.0
        %1064 = vmatpush1.msra.mxu0 0.0
        %1065 = vmatprep.subr.mxu0 0.0
        %1066 = vmatpush1.msra.mxu0 0.0
        %1067 = vmatprep.subr.mxu0 0.0
        %1068 = vmatpush1.msra.mxu0 0.0
        %1069 = vmatprep.subr.mxu0 0.0
        %1070 = vmatpush1.msra.mxu0 0.0
        %1071 = vmatprep.subr.mxu0 0.0
        %1072 = vmatpush1.msra.mxu0 0.0
        %1073 = vmatprep.subr.mxu0 0.0
        %1074 = vmatpush1.msra.mxu0 0.0
        %1075 = vmatprep.subr.mxu0 0.0
        %1076 = vmatpush1.msra.mxu0 0.0
        %1077 = vmatprep.subr.mxu0 0.0
        %1078 = vmatpush1.msra.mxu0 0.0
        %1079 = vmatprep.subr.mxu0 0.0
        %1080 = vmatpush1.msra.mxu0 0.0
        %1081 = vmatprep.mubr.f32.mxu0 0.0
        %1082 = vmatmul.mubr.f32.gmra.mrb[0].mxu0 %v1015
        %v1083 = vpop.f32.mrb[0].mxu0
        %v1084 = vadd.f32 0.0, %v1083
        %v1085 = vpop.f32.mrb[0].mxu0
        %1086 = vdwg.mxu0
        %1087 = vrot.lane.b32.xlu0 %v607, 56
        %v1088 = vpop.permute.xlu0 %1087
        %v1091 = vsel %vm644, %v1003, 0
        %1093 = vmatprep.subr.mxu0 0.0
        %1094 = vmatpush1.msra.mxu0 %v1088
        %1095 = vmatprep.subr.mxu0 0.0
        %1096 = vmatpush1.msra.mxu0 0.0
        %1097 = vmatprep.subr.mxu0 0.0
        %1098 = vmatpush1.msra.mxu0 0.0
        %1099 = vmatprep.subr.mxu0 0.0
        %1100 = vmatpush1.msra.mxu0 0.0
        %1101 = vmatprep.subr.mxu0 0.0
        %1102 = vmatpush1.msra.mxu0 0.0
        %1103 = vmatprep.subr.mxu0 0.0
        %1104 = vmatpush1.msra.mxu0 0.0
        %1105 = vmatprep.subr.mxu0 0.0
        %1106 = vmatpush1.msra.mxu0 0.0
        %1107 = vmatprep.subr.mxu0 0.0
        %1108 = vmatpush1.msra.mxu0 0.0
        %1109 = vmatprep.subr.mxu0 0.0
        %1110 = vmatpush1.msra.mxu0 0.0
        %1111 = vmatprep.subr.mxu0 0.0
        %1112 = vmatpush1.msra.mxu0 0.0
        %1113 = vmatprep.subr.mxu0 0.0
        %1114 = vmatpush1.msra.mxu0 0.0
        %1115 = vmatprep.subr.mxu0 0.0
        %1116 = vmatpush1.msra.mxu0 0.0
        %1117 = vmatprep.subr.mxu0 0.0
        %1118 = vmatpush1.msra.mxu0 0.0
        %1119 = vmatprep.subr.mxu0 0.0
        %1120 = vmatpush1.msra.mxu0 0.0
        %1121 = vmatprep.subr.mxu0 0.0
        %1122 = vmatpush1.msra.mxu0 0.0
        %1123 = vmatprep.subr.mxu0 0.0
        %1124 = vmatpush1.msra.mxu0 0.0
        %1125 = vmatprep.subr.mxu0 0.0
        %1126 = vmatpush1.msra.mxu0 0.0
        %1127 = vmatprep.subr.mxu0 0.0
        %1128 = vmatpush1.msra.mxu0 0.0
        %1129 = vmatprep.subr.mxu0 0.0
        %1130 = vmatpush1.msra.mxu0 0.0
        %1131 = vmatprep.subr.mxu0 0.0
        %1132 = vmatpush1.msra.mxu0 0.0
        %1133 = vmatprep.subr.mxu0 0.0
        %1134 = vmatpush1.msra.mxu0 0.0
        %1135 = vmatprep.subr.mxu0 0.0
        %1136 = vmatpush1.msra.mxu0 0.0
        %1137 = vmatprep.subr.mxu0 0.0
        %1138 = vmatpush1.msra.mxu0 0.0
        %1139 = vmatprep.subr.mxu0 0.0
        %1140 = vmatpush1.msra.mxu0 0.0
        %1141 = vmatprep.subr.mxu0 0.0
        %1142 = vmatpush1.msra.mxu0 0.0
        %1143 = vmatprep.subr.mxu0 0.0
        %1144 = vmatpush1.msra.mxu0 0.0
        %1145 = vmatprep.subr.mxu0 0.0
        %1146 = vmatpush1.msra.mxu0 0.0
        %1147 = vmatprep.subr.mxu0 0.0
        %1148 = vmatpush1.msra.mxu0 0.0
        %1149 = vmatprep.subr.mxu0 0.0
        %1150 = vmatpush1.msra.mxu0 0.0
        %1151 = vmatprep.subr.mxu0 0.0
        %1152 = vmatpush1.msra.mxu0 0.0
        %1153 = vmatprep.subr.mxu0 0.0
        %1154 = vmatpush1.msra.mxu0 0.0
        %1155 = vmatprep.subr.mxu0 0.0
        %1156 = vmatpush1.msra.mxu0 0.0
        %1157 = vmatprep.mubr.f32.mxu0 0.0
        %1158 = vmatmul.mubr.f32.gmra.mrb[0].mxu0 %v1091
        %v1159 = vpop.f32.mrb[0].mxu0
        %v1160 = vadd.f32 0.0, %v1159
        %v1161 = vpop.f32.mrb[0].mxu0
        %1162 = vdwg.mxu0
        %v1164 = vsel %vm644, %v1160, 0
        %1166 = vmatprep.subr.mxu0 0.0
        %1167 = vmatpush1.msra.mxu0 %v1007
        %1168 = vmatprep.subr.mxu0 0.0
        %1169 = vmatpush1.msra.mxu0 0.0
        %1170 = vmatprep.subr.mxu0 0.0
        %1171 = vmatpush1.msra.mxu0 0.0
        %1172 = vmatprep.subr.mxu0 0.0
        %1173 = vmatpush1.msra.mxu0 0.0
        %1174 = vmatprep.subr.mxu0 0.0
        %1175 = vmatpush1.msra.mxu0 0.0
        %1176 = vmatprep.subr.mxu0 0.0
        %1177 = vmatpush1.msra.mxu0 0.0
        %1178 = vmatprep.subr.mxu0 0.0
        %1179 = vmatpush1.msra.mxu0 0.0
        %1180 = vmatprep.subr.mxu0 0.0
        %1181 = vmatpush1.msra.mxu0 0.0
        %1182 = vmatprep.subr.mxu0 0.0
        %1183 = vmatpush1.msra.mxu0 0.0
        %1184 = vmatprep.subr.mxu0 0.0
        %1185 = vmatpush1.msra.mxu0 0.0
        %1186 = vmatprep.subr.mxu0 0.0
        %1187 = vmatpush1.msra.mxu0 0.0
        %1188 = vmatprep.subr.mxu0 0.0
        %1189 = vmatpush1.msra.mxu0 0.0
        %1190 = vmatprep.subr.mxu0 0.0
        %1191 = vmatpush1.msra.mxu0 0.0
        %1192 = vmatprep.subr.mxu0 0.0
        %1193 = vmatpush1.msra.mxu0 0.0
        %1194 = vmatprep.subr.mxu0 0.0
        %1195 = vmatpush1.msra.mxu0 0.0
        %1196 = vmatprep.subr.mxu0 0.0
        %1197 = vmatpush1.msra.mxu0 0.0
        %1198 = vmatprep.subr.mxu0 0.0
        %1199 = vmatpush1.msra.mxu0 0.0
        %1200 = vmatprep.subr.mxu0 0.0
        %1201 = vmatpush1.msra.mxu0 0.0
        %1202 = vmatprep.subr.mxu0 0.0
        %1203 = vmatpush1.msra.mxu0 0.0
        %1204 = vmatprep.subr.mxu0 0.0
        %1205 = vmatpush1.msra.mxu0 0.0
        %1206 = vmatprep.subr.mxu0 0.0
        %1207 = vmatpush1.msra.mxu0 0.0
        %1208 = vmatprep.subr.mxu0 0.0
        %1209 = vmatpush1.msra.mxu0 0.0
        %1210 = vmatprep.subr.mxu0 0.0
        %1211 = vmatpush1.msra.mxu0 0.0
        %1212 = vmatprep.subr.mxu0 0.0
        %1213 = vmatpush1.msra.mxu0 0.0
        %1214 = vmatprep.subr.mxu0 0.0
        %1215 = vmatpush1.msra.mxu0 0.0
        %1216 = vmatprep.subr.mxu0 0.0
        %1217 = vmatpush1.msra.mxu0 0.0
        %1218 = vmatprep.subr.mxu0 0.0
        %1219 = vmatpush1.msra.mxu0 0.0
        %1220 = vmatprep.subr.mxu0 0.0
        %1221 = vmatpush1.msra.mxu0 0.0
        %1222 = vmatprep.subr.mxu0 0.0
        %1223 = vmatpush1.msra.mxu0 0.0
        %1224 = vmatprep.subr.mxu0 0.0
        %1225 = vmatpush1.msra.mxu0 0.0
        %1226 = vmatprep.subr.mxu0 0.0
        %1227 = vmatpush1.msra.mxu0 0.0
        %1228 = vmatprep.subr.mxu0 0.0
        %1229 = vmatpush1.msra.mxu0 0.0
        %1230 = vmatprep.mubr.f32.mxu0 0.0
        %1231 = vmatmul.mubr.f32.gmra.mrb[0].mxu0 %v1164
        %v1232 = vpop.f32.mrb[0].mxu0
        %v1233 = vadd.f32 0.0, %v1232
        %v1234 = vpop.f32.mrb[0].mxu0
        %1235 = vdwg.mxu0
        %v1237 = vsel %vm644, %v1084, 0
        %1239 = vmatprep.subr.mxu0 0.0
        %1240 = vmatpush1.msra.mxu0 %v1006
        %1241 = vmatprep.subr.mxu0 0.0
        %1242 = vmatpush1.msra.mxu0 0.0
        %1243 = vmatprep.subr.mxu0 0.0
        %1244 = vmatpush1.msra.mxu0 0.0
        %1245 = vmatprep.subr.mxu0 0.0
        %1246 = vmatpush1.msra.mxu0 0.0
        %1247 = vmatprep.subr.mxu0 0.0
        %1248 = vmatpush1.msra.mxu0 0.0
        %1249 = vmatprep.subr.mxu0 0.0
        %1250 = vmatpush1.msra.mxu0 0.0
        %1251 = vmatprep.subr.mxu0 0.0
        %1252 = vmatpush1.msra.mxu0 0.0
        %1253 = vmatprep.subr.mxu0 0.0
        %1254 = vmatpush1.msra.mxu0 0.0
        %1255 = vmatprep.subr.mxu0 0.0
        %1256 = vmatpush1.msra.mxu0 0.0
        %1257 = vmatprep.subr.mxu0 0.0
        %1258 = vmatpush1.msra.mxu0 0.0
        %1259 = vmatprep.subr.mxu0 0.0
        %1260 = vmatpush1.msra.mxu0 0.0
        %1261 = vmatprep.subr.mxu0 0.0
        %1262 = vmatpush1.msra.mxu0 0.0
        %1263 = vmatprep.subr.mxu0 0.0
        %1264 = vmatpush1.msra.mxu0 0.0
        %1265 = vmatprep.subr.mxu0 0.0
        %1266 = vmatpush1.msra.mxu0 0.0
        %1267 = vmatprep.subr.mxu0 0.0
        %1268 = vmatpush1.msra.mxu0 0.0
        %1269 = vmatprep.subr.mxu0 0.0
        %1270 = vmatpush1.msra.mxu0 0.0
        %1271 = vmatprep.subr.mxu0 0.0
        %1272 = vmatpush1.msra.mxu0 0.0
        %1273 = vmatprep.subr.mxu0 0.0
        %1274 = vmatpush1.msra.mxu0 0.0
        %1275 = vmatprep.subr.mxu0 0.0
        %1276 = vmatpush1.msra.mxu0 0.0
        %1277 = vmatprep.subr.mxu0 0.0
        %1278 = vmatpush1.msra.mxu0 0.0
        %1279 = vmatprep.subr.mxu0 0.0
        %1280 = vmatpush1.msra.mxu0 0.0
        %1281 = vmatprep.subr.mxu0 0.0
        %1282 = vmatpush1.msra.mxu0 0.0
        %1283 = vmatprep.subr.mxu0 0.0
        %1284 = vmatpush1.msra.mxu0 0.0
        %1285 = vmatprep.subr.mxu0 0.0
        %1286 = vmatpush1.msra.mxu0 0.0
        %1287 = vmatprep.subr.mxu0 0.0
        %1288 = vmatpush1.msra.mxu0 0.0
        %1289 = vmatprep.subr.mxu0 0.0
        %1290 = vmatpush1.msra.mxu0 0.0
        %1291 = vmatprep.subr.mxu0 0.0
        %1292 = vmatpush1.msra.mxu0 0.0
        %1293 = vmatprep.subr.mxu0 0.0
        %1294 = vmatpush1.msra.mxu0 0.0
        %1295 = vmatprep.subr.mxu0 0.0
        %1296 = vmatpush1.msra.mxu0 0.0
        %1297 = vmatprep.subr.mxu0 0.0
        %1298 = vmatpush1.msra.mxu0 0.0
        %1299 = vmatprep.subr.mxu0 0.0
        %1300 = vmatpush1.msra.mxu0 0.0
        %1301 = vmatprep.subr.mxu0 0.0
        %1302 = vmatpush1.msra.mxu0 0.0
        %1303 = vmatprep.mubr.f32.mxu0 0.0
        %1304 = vmatmul.mubr.f32.gmra.mrb[0].mxu0 %v1237
        %v1305 = vpop.f32.mrb[0].mxu0
        %v1306 = vadd.f32 %v1233, %v1305
        %v1307 = vpop.f32.mrb[0].mxu0
        %1308 = vdwg.mxu0
        %1309 = vrot.lane.b32.xlu0 %v607, 48
        %v1310 = vpop.permute.xlu0 %1309
        %v1313 = vsel %vm644, %v1004, 0
        %1315 = vmatprep.subr.mxu0 0.0
        %1316 = vmatpush1.msra.mxu0 %v1310
        %1317 = vmatprep.subr.mxu0 0.0
        %1318 = vmatpush1.msra.mxu0 0.0
        %1319 = vmatprep.subr.mxu0 0.0
        %1320 = vmatpush1.msra.mxu0 0.0
        %1321 = vmatprep.subr.mxu0 0.0
        %1322 = vmatpush1.msra.mxu0 0.0
        %1323 = vmatprep.subr.mxu0 0.0
        %1324 = vmatpush1.msra.mxu0 0.0
        %1325 = vmatprep.subr.mxu0 0.0
        %1326 = vmatpush1.msra.mxu0 0.0
        %1327 = vmatprep.subr.mxu0 0.0
        %1328 = vmatpush1.msra.mxu0 0.0
        %1329 = vmatprep.subr.mxu0 0.0
        %1330 = vmatpush1.msra.mxu0 0.0
        %1331 = vmatprep.subr.mxu0 0.0
        %1332 = vmatpush1.msra.mxu0 0.0
        %1333 = vmatprep.subr.mxu0 0.0
        %1334 = vmatpush1.msra.mxu0 0.0
        %1335 = vmatprep.subr.mxu0 0.0
        %1336 = vmatpush1.msra.mxu0 0.0
        %1337 = vmatprep.subr.mxu0 0.0
        %1338 = vmatpush1.msra.mxu0 0.0
        %1339 = vmatprep.subr.mxu0 0.0
        %1340 = vmatpush1.msra.mxu0 0.0
        %1341 = vmatprep.subr.mxu0 0.0
        %1342 = vmatpush1.msra.mxu0 0.0
        %1343 = vmatprep.subr.mxu0 0.0
        %1344 = vmatpush1.msra.mxu0 0.0
        %1345 = vmatprep.subr.mxu0 0.0
        %1346 = vmatpush1.msra.mxu0 0.0
        %1347 = vmatprep.subr.mxu0 0.0
        %1348 = vmatpush1.msra.mxu0 0.0
        %1349 = vmatprep.subr.mxu0 0.0
        %1350 = vmatpush1.msra.mxu0 0.0
        %1351 = vmatprep.subr.mxu0 0.0
        %1352 = vmatpush1.msra.mxu0 0.0
        %1353 = vmatprep.subr.mxu0 0.0
        %1354 = vmatpush1.msra.mxu0 0.0
        %1355 = vmatprep.subr.mxu0 0.0
        %1356 = vmatpush1.msra.mxu0 0.0
        %1357 = vmatprep.subr.mxu0 0.0
        %1358 = vmatpush1.msra.mxu0 0.0
        %1359 = vmatprep.subr.mxu0 0.0
        %1360 = vmatpush1.msra.mxu0 0.0
        %1361 = vmatprep.subr.mxu0 0.0
        %1362 = vmatpush1.msra.mxu0 0.0
        %1363 = vmatprep.subr.mxu0 0.0
        %1364 = vmatpush1.msra.mxu0 0.0
        %1365 = vmatprep.subr.mxu0 0.0
        %1366 = vmatpush1.msra.mxu0 0.0
        %1367 = vmatprep.subr.mxu0 0.0
        %1368 = vmatpush1.msra.mxu0 0.0
        %1369 = vmatprep.subr.mxu0 0.0
        %1370 = vmatpush1.msra.mxu0 0.0
        %1371 = vmatprep.subr.mxu0 0.0
        %1372 = vmatpush1.msra.mxu0 0.0
        %1373 = vmatprep.subr.mxu0 0.0
        %1374 = vmatpush1.msra.mxu0 0.0
        %1375 = vmatprep.subr.mxu0 0.0
        %1376 = vmatpush1.msra.mxu0 0.0
        %1377 = vmatprep.subr.mxu0 0.0
        %1378 = vmatpush1.msra.mxu0 0.0
        %1379 = vmatprep.mubr.f32.mxu0 0.0
        %1380 = vmatmul.mubr.f32.gmra.mrb[0].mxu0 %v1313
        %v1381 = vpop.f32.mrb[0].mxu0
        %v1382 = vadd.f32 0.0, %v1381
        %v1383 = vpop.f32.mrb[0].mxu0
        %1384 = vdwg.mxu0
        %v1386 = vsel %vm644, %v1382, 0
        %1388 = vmatprep.subr.mxu0 0.0
        %1389 = vmatpush1.msra.mxu0 %v1008
        %1390 = vmatprep.subr.mxu0 0.0
        %1391 = vmatpush1.msra.mxu0 0.0
        %1392 = vmatprep.subr.mxu0 0.0
        %1393 = vmatpush1.msra.mxu0 0.0
        %1394 = vmatprep.subr.mxu0 0.0
        %1395 = vmatpush1.msra.mxu0 0.0
        %1396 = vmatprep.subr.mxu0 0.0
        %1397 = vmatpush1.msra.mxu0 0.0
        %1398 = vmatprep.subr.mxu0 0.0
        %1399 = vmatpush1.msra.mxu0 0.0
        %1400 = vmatprep.subr.mxu0 0.0
        %1401 = vmatpush1.msra.mxu0 0.0
        %1402 = vmatprep.subr.mxu0 0.0
        %1403 = vmatpush1.msra.mxu0 0.0
        %1404 = vmatprep.subr.mxu0 0.0
        %1405 = vmatpush1.msra.mxu0 0.0
        %1406 = vmatprep.subr.mxu0 0.0
        %1407 = vmatpush1.msra.mxu0 0.0
        %1408 = vmatprep.subr.mxu0 0.0
        %1409 = vmatpush1.msra.mxu0 0.0
        %1410 = vmatprep.subr.mxu0 0.0
        %1411 = vmatpush1.msra.mxu0 0.0
        %1412 = vmatprep.subr.mxu0 0.0
        %1413 = vmatpush1.msra.mxu0 0.0
        %1414 = vmatprep.subr.mxu0 0.0
        %1415 = vmatpush1.msra.mxu0 0.0
        %1416 = vmatprep.subr.mxu0 0.0
        %1417 = vmatpush1.msra.mxu0 0.0
        %1418 = vmatprep.subr.mxu0 0.0
        %1419 = vmatpush1.msra.mxu0 0.0
        %1420 = vmatprep.subr.mxu0 0.0
        %1421 = vmatpush1.msra.mxu0 0.0
        %1422 = vmatprep.subr.mxu0 0.0
        %1423 = vmatpush1.msra.mxu0 0.0
        %1424 = vmatprep.subr.mxu0 0.0
        %1425 = vmatpush1.msra.mxu0 0.0
        %1426 = vmatprep.subr.mxu0 0.0
        %1427 = vmatpush1.msra.mxu0 0.0
        %1428 = vmatprep.subr.mxu0 0.0
        %1429 = vmatpush1.msra.mxu0 0.0
        %1430 = vmatprep.subr.mxu0 0.0
        %1431 = vmatpush1.msra.mxu0 0.0
        %1432 = vmatprep.subr.mxu0 0.0
        %1433 = vmatpush1.msra.mxu0 0.0
        %1434 = vmatprep.subr.mxu0 0.0
        %1435 = vmatpush1.msra.mxu0 0.0
        %1436 = vmatprep.subr.mxu0 0.0
        %1437 = vmatpush1.msra.mxu0 0.0
        %1438 = vmatprep.subr.mxu0 0.0
        %1439 = vmatpush1.msra.mxu0 0.0
        %1440 = vmatprep.subr.mxu0 0.0
        %1441 = vmatpush1.msra.mxu0 0.0
        %1442 = vmatprep.subr.mxu0 0.0
        %1443 = vmatpush1.msra.mxu0 0.0
        %1444 = vmatprep.subr.mxu0 0.0
        %1445 = vmatpush1.msra.mxu0 0.0
        %1446 = vmatprep.subr.mxu0 0.0
        %1447 = vmatpush1.msra.mxu0 0.0
        %1448 = vmatprep.subr.mxu0 0.0
        %1449 = vmatpush1.msra.mxu0 0.0
        %1450 = vmatprep.subr.mxu0 0.0
        %1451 = vmatpush1.msra.mxu0 0.0
        %1452 = vmatprep.mubr.f32.mxu0 0.0
        %1453 = vmatmul.mubr.f32.gmra.mrb[0].mxu0 %v1386
        %v1454 = vpop.f32.mrb[0].mxu0
        %v1455 = vadd.f32 0.0, %v1454
        %v1456 = vpop.f32.mrb[0].mxu0
        %1457 = vdwg.mxu0
        %v1458 = vadd.f32 %v1306, %v1455
        %1459 = vrot.lane.b32.xlu0 %v607, 40
        %v1460 = vpop.permute.xlu0 %1459
        %v1463 = vsel %vm644, %v1005, 0
        %1465 = vmatprep.subr.mxu0 0.0
        %1466 = vmatpush1.msra.mxu0 %v1460
        %1467 = vmatprep.subr.mxu0 0.0
        %1468 = vmatpush1.msra.mxu0 0.0
        %1469 = vmatprep.subr.mxu0 0.0
        %1470 = vmatpush1.msra.mxu0 0.0
        %1471 = vmatprep.subr.mxu0 0.0
        %1472 = vmatpush1.msra.mxu0 0.0
        %1473 = vmatprep.subr.mxu0 0.0
        %1474 = vmatpush1.msra.mxu0 0.0
        %1475 = vmatprep.subr.mxu0 0.0
        %1476 = vmatpush1.msra.mxu0 0.0
        %1477 = vmatprep.subr.mxu0 0.0
        %1478 = vmatpush1.msra.mxu0 0.0
        %1479 = vmatprep.subr.mxu0 0.0
        %1480 = vmatpush1.msra.mxu0 0.0
        %1481 = vmatprep.subr.mxu0 0.0
        %1482 = vmatpush1.msra.mxu0 0.0
        %1483 = vmatprep.subr.mxu0 0.0
        %1484 = vmatpush1.msra.mxu0 0.0
        %1485 = vmatprep.subr.mxu0 0.0
        %1486 = vmatpush1.msra.mxu0 0.0
        %1487 = vmatprep.subr.mxu0 0.0
        %1488 = vmatpush1.msra.mxu0 0.0
        %1489 = vmatprep.subr.mxu0 0.0
        %1490 = vmatpush1.msra.mxu0 0.0
        %1491 = vmatprep.subr.mxu0 0.0
        %1492 = vmatpush1.msra.mxu0 0.0
        %1493 = vmatprep.subr.mxu0 0.0
        %1494 = vmatpush1.msra.mxu0 0.0
        %1495 = vmatprep.subr.mxu0 0.0
        %1496 = vmatpush1.msra.mxu0 0.0
        %1497 = vmatprep.subr.mxu0 0.0
        %1498 = vmatpush1.msra.mxu0 0.0
        %1499 = vmatprep.subr.mxu0 0.0
        %1500 = vmatpush1.msra.mxu0 0.0
        %1501 = vmatprep.subr.mxu0 0.0
        %1502 = vmatpush1.msra.mxu0 0.0
        %1503 = vmatprep.subr.mxu0 0.0
        %1504 = vmatpush1.msra.mxu0 0.0
        %1505 = vmatprep.subr.mxu0 0.0
        %1506 = vmatpush1.msra.mxu0 0.0
        %1507 = vmatprep.subr.mxu0 0.0
        %1508 = vmatpush1.msra.mxu0 0.0
        %1509 = vmatprep.subr.mxu0 0.0
        %1510 = vmatpush1.msra.mxu0 0.0
        %1511 = vmatprep.subr.mxu0 0.0
        %1512 = vmatpush1.msra.mxu0 0.0
        %1513 = vmatprep.subr.mxu0 0.0
        %1514 = vmatpush1.msra.mxu0 0.0
        %1515 = vmatprep.subr.mxu0 0.0
        %1516 = vmatpush1.msra.mxu0 0.0
        %1517 = vmatprep.subr.mxu0 0.0
        %1518 = vmatpush1.msra.mxu0 0.0
        %1519 = vmatprep.subr.mxu0 0.0
        %1520 = vmatpush1.msra.mxu0 0.0
        %1521 = vmatprep.subr.mxu0 0.0
        %1522 = vmatpush1.msra.mxu0 0.0
        %1523 = vmatprep.subr.mxu0 0.0
        %1524 = vmatpush1.msra.mxu0 0.0
        %1525 = vmatprep.subr.mxu0 0.0
        %1526 = vmatpush1.msra.mxu0 0.0
        %1527 = vmatprep.subr.mxu0 0.0
        %1528 = vmatpush1.msra.mxu0 0.0
        %1529 = vmatprep.mubr.f32.mxu0 0.0
        %1530 = vmatmul.mubr.f32.gmra.mrb[0].mxu0 %v1463
        %v1531 = vpop.f32.mrb[0].mxu0
        %v1532 = vadd.f32 0.0, %v1531
        %v1533 = vpop.f32.mrb[0].mxu0
        %1534 = vdwg.mxu0
        %v1536 = vsel %vm644, %v1532, 0
        %1538 = vmatprep.subr.mxu0 0.0
        %1539 = vmatpush1.msra.mxu0 %v1009
        %1540 = vmatprep.subr.mxu0 0.0
        %1541 = vmatpush1.msra.mxu0 0.0
        %1542 = vmatprep.subr.mxu0 0.0
        %1543 = vmatpush1.msra.mxu0 0.0
        %1544 = vmatprep.subr.mxu0 0.0
        %1545 = vmatpush1.msra.mxu0 0.0
        %1546 = vmatprep.subr.mxu0 0.0
        %1547 = vmatpush1.msra.mxu0 0.0
        %1548 = vmatprep.subr.mxu0 0.0
        %1549 = vmatpush1.msra.mxu0 0.0
        %1550 = vmatprep.subr.mxu0 0.0
        %1551 = vmatpush1.msra.mxu0 0.0
        %1552 = vmatprep.subr.mxu0 0.0
        %1553 = vmatpush1.msra.mxu0 0.0
        %1554 = vmatprep.subr.mxu0 0.0
        %1555 = vmatpush1.msra.mxu0 0.0
        %1556 = vmatprep.subr.mxu0 0.0
        %1557 = vmatpush1.msra.mxu0 0.0
        %1558 = vmatprep.subr.mxu0 0.0
        %1559 = vmatpush1.msra.mxu0 0.0
        %1560 = vmatprep.subr.mxu0 0.0
        %1561 = vmatpush1.msra.mxu0 0.0
        %1562 = vmatprep.subr.mxu0 0.0
        %1563 = vmatpush1.msra.mxu0 0.0
        %1564 = vmatprep.subr.mxu0 0.0
        %1565 = vmatpush1.msra.mxu0 0.0
        %1566 = vmatprep.subr.mxu0 0.0
        %1567 = vmatpush1.msra.mxu0 0.0
        %1568 = vmatprep.subr.mxu0 0.0
        %1569 = vmatpush1.msra.mxu0 0.0
        %1570 = vmatprep.subr.mxu0 0.0
        %1571 = vmatpush1.msra.mxu0 0.0
        %1572 = vmatprep.subr.mxu0 0.0
        %1573 = vmatpush1.msra.mxu0 0.0
        %1574 = vmatprep.subr.mxu0 0.0
        %1575 = vmatpush1.msra.mxu0 0.0
        %1576 = vmatprep.subr.mxu0 0.0
        %1577 = vmatpush1.msra.mxu0 0.0
        %1578 = vmatprep.subr.mxu0 0.0
        %1579 = vmatpush1.msra.mxu0 0.0
        %1580 = vmatprep.subr.mxu0 0.0
        %1581 = vmatpush1.msra.mxu0 0.0
        %1582 = vmatprep.subr.mxu0 0.0
        %1583 = vmatpush1.msra.mxu0 0.0
        %1584 = vmatprep.subr.mxu0 0.0
        %1585 = vmatpush1.msra.mxu0 0.0
        %1586 = vmatprep.subr.mxu0 0.0
        %1587 = vmatpush1.msra.mxu0 0.0
        %1588 = vmatprep.subr.mxu0 0.0
        %1589 = vmatpush1.msra.mxu0 0.0
        %1590 = vmatprep.subr.mxu0 0.0
        %1591 = vmatpush1.msra.mxu0 0.0
        %1592 = vmatprep.subr.mxu0 0.0
        %1593 = vmatpush1.msra.mxu0 0.0
        %1594 = vmatprep.subr.mxu0 0.0
        %1595 = vmatpush1.msra.mxu0 0.0
        %1596 = vmatprep.subr.mxu0 0.0
        %1597 = vmatpush1.msra.mxu0 0.0
        %1598 = vmatprep.subr.mxu0 0.0
        %1599 = vmatpush1.msra.mxu0 0.0
        %1600 = vmatprep.subr.mxu0 0.0
        %1601 = vmatpush1.msra.mxu0 0.0
        %1602 = vmatprep.mubr.f32.mxu0 0.0
        %1603 = vmatmul.mubr.f32.gmra.mrb[0].mxu0 %v1536
        %v1604 = vpop.f32.mrb[0].mxu0
        %v1605 = vadd.f32 0.0, %v1604
        %v1606 = vpop.f32.mrb[0].mxu0
        %1607 = vdwg.mxu0
        %v1608 = vadd.f32 %v1458, %v1605
        %v1609 = vadd.f32 %v490, %v1608
        %v1610 = vld [vmem:[%s8] sm:$0x1]
        %v1612 = vlaneseq
        %v1613 = vshrl.u32 %v1612, 7
        %v1614 = vsub.s32 0, %v1613
        %v1615 = vrot.slane %v1610, %v1614
        %v1617 = vadd.f32 %v1609, %v1615
        %v1618 = vmul.f32 %v1617, %v1617
        %v1619 = vsel %vm492, %v1618, 0.0
        %1620 = vadd.xlane.f32.xlu0 %v1619
        %v1621 = vpop.xlane.xlu0 %1620
        %v1622 = vmul.f32 %v1621, %v496
        %v1623 = vld [vmem:[%s9] sm:$0x1]
        %v1624 = vadd.f32 %v1622, 1e-05
        %v1625 = vrsqrt.pop %v1624
        %v1626 = vmul.f32 %v1617, %v1625
        %v1628 = vlaneseq
        %v1629 = vshrl.u32 %v1628, 7
        %v1630 = vsub.s32 0, %v1629
        %v1631 = vrot.slane %v1623, %v1630
        %v1633 = vmul.f32 %v1631, %v1626
        %v1634 = vld [vmem:[%s10] sm:$0x1]
        %v1636 = vlaneseq
        %v1637 = vshrl.u32 %v1636, 7
        %v1638 = vsub.s32 0, %v1637
        %v1639 = vrot.slane %v1634, %v1638
        %v1641 = vadd.f32 %v1633, %v1639
        %v1642 = vld [vmem:[%s11] sm:$0xff]
        %v1643 = vld [vmem:[%s11 + $0x8] sm:$0xff]
        %v1644 = vld [vmem:[%s11 + $0x10] sm:$0xff]
        %v1645 = vld [vmem:[%s11 + $0x18] sm:$0xff]
        %v1646 = vld [vmem:[%s12] sm:$0x1]
        %v1648 = vlaneseq
        %v1649 = vshrl.u32 %v1648, 7
        %v1650 = vsub.s32 0, %v1649
        %v1651 = vrot.slane %v1646, %v1650
        %v1654 = vsel %vm492, %v1641, 0
        %1656 = vmatprep.subr.mxu0 0.0
        %1657 = vmatpush1.msra.mxu0 %v1642
        %1658 = vmatprep.subr.mxu0 0.0
        %1659 = vmatpush1.msra.mxu0 %v1643
        %1660 = vmatprep.subr.mxu0 0.0
        %1661 = vmatpush1.msra.mxu0 %v1644
        %1662 = vmatprep.subr.mxu0 0.0
        %1663 = vmatpush1.msra.mxu0 %v1645
        %1664 = vmatprep.subr.mxu0 0.0
        %1665 = vmatpush1.msra.mxu0 0.0
        %1666 = vmatprep.subr.mxu0 0.0
        %1667 = vmatpush1.msra.mxu0 0.0
        %1668 = vmatprep.subr.mxu0 0.0
        %1669 = vmatpush1.msra.mxu0 0.0
        %1670 = vmatprep.subr.mxu0 0.0
        %1671 = vmatpush1.msra.mxu0 0.0
        %1672 = vmatprep.subr.mxu0 0.0
        %1673 = vmatpush1.msra.mxu0 0.0
        %1674 = vmatprep.subr.mxu0 0.0
        %1675 = vmatpush1.msra.mxu0 0.0
        %1676 = vmatprep.subr.mxu0 0.0
        %1677 = vmatpush1.msra.mxu0 0.0
        %1678 = vmatprep.subr.mxu0 0.0
        %1679 = vmatpush1.msra.mxu0 0.0
        %1680 = vmatprep.subr.mxu0 0.0
        %1681 = vmatpush1.msra.mxu0 0.0
        %1682 = vmatprep.subr.mxu0 0.0
        %1683 = vmatpush1.msra.mxu0 0.0
        %1684 = vmatprep.subr.mxu0 0.0
        %1685 = vmatpush1.msra.mxu0 0.0
        %1686 = vmatprep.subr.mxu0 0.0
        %1687 = vmatpush1.msra.mxu0 0.0
        %1688 = vmatprep.subr.mxu0 0.0
        %1689 = vmatpush1.msra.mxu0 0.0
        %1690 = vmatprep.subr.mxu0 0.0
        %1691 = vmatpush1.msra.mxu0 0.0
        %1692 = vmatprep.subr.mxu0 0.0
        %1693 = vmatpush1.msra.mxu0 0.0
        %1694 = vmatprep.subr.mxu0 0.0
        %1695 = vmatpush1.msra.mxu0 0.0
        %1696 = vmatprep.subr.mxu0 0.0
        %1697 = vmatpush1.msra.mxu0 0.0
        %1698 = vmatprep.subr.mxu0 0.0
        %1699 = vmatpush1.msra.mxu0 0.0
        %1700 = vmatprep.subr.mxu0 0.0
        %1701 = vmatpush1.msra.mxu0 0.0
        %1702 = vmatprep.subr.mxu0 0.0
        %1703 = vmatpush1.msra.mxu0 0.0
        %1704 = vmatprep.subr.mxu0 0.0
        %1705 = vmatpush1.msra.mxu0 0.0
        %1706 = vmatprep.subr.mxu0 0.0
        %1707 = vmatpush1.msra.mxu0 0.0
        %1708 = vmatprep.subr.mxu0 0.0
        %1709 = vmatpush1.msra.mxu0 0.0
        %1710 = vmatprep.subr.mxu0 0.0
        %1711 = vmatpush1.msra.mxu0 0.0
        %1712 = vmatprep.subr.mxu0 0.0
        %1713 = vmatpush1.msra.mxu0 0.0
        %1714 = vmatprep.subr.mxu0 0.0
        %1715 = vmatpush1.msra.mxu0 0.0
        %1716 = vmatprep.subr.mxu0 0.0
        %1717 = vmatpush1.msra.mxu0 0.0
        %1718 = vmatprep.subr.mxu0 0.0
        %1719 = vmatpush1.msra.mxu0 0.0
        %1720 = vmatprep.mubr.f32.mxu0 0.0
        %1721 = vmatmul.mubr.f32.gmra.mrb[0].mxu0 %v1654
        %v1722 = vpop.f32.mrb[0].mxu0
        %v1723 = vadd.f32 %v1651, %v1722
        %v1724 = vpop.f32.mrb[0].mxu0
        %1725 = vdwg.mxu0
        %v1726 = vmul.f32 %v1723, 0.5
        %v1727 = vmul.f32 %v1723, 0.044715
        %v1728 = vmul.f32 %v1727, %v1723
        %v1729 = vmul.f32 %v1728, %v1723
        %v1730 = vadd.f32 %v1723, %v1729
        %v1731 = vmul.f32 %v1730, 0.7978846
        %v1732 = vtanh.pop %v1731
        %v1733 = vadd.f32 %v1732, 1.0
        %v1734 = vmul.f32 %v1726, %v1733
        %v1735 = vld [vmem:[%s13] sm:$0xff]
        %v1736 = vld [vmem:[%s13 + $0x8] sm:$0xff]
        %v1737 = vld [vmem:[%s13 + $0x10] sm:$0xff]
        %v1738 = vld [vmem:[%s13 + $0x18] sm:$0xff]
        %v1739 = vld [vmem:[%s13 + $0x20] sm:$0xff]
        %v1740 = vld [vmem:[%s13 + $0x28] sm:$0xff]
        %v1741 = vld [vmem:[%s13 + $0x30] sm:$0xff]
        %v1742 = vld [vmem:[%s13 + $0x38] sm:$0xff]
        %v1743 = vld [vmem:[%s13 + $0x40] sm:$0xff]
        %v1744 = vld [vmem:[%s13 + $0x48] sm:$0xff]
        %v1745 = vld [vmem:[%s13 + $0x50] sm:$0xff]
        %v1746 = vld [vmem:[%s13 + $0x58] sm:$0xff]
        %v1747 = vld [vmem:[%s13 + $0x60] sm:$0xff]
        %v1748 = vld [vmem:[%s13 + $0x68] sm:$0xff]
        %v1749 = vld [vmem:[%s13 + $0x70] sm:$0xff]
        %v1750 = vld [vmem:[%s13 + $0x78] sm:$0xff]
        %v1751 = vld [vmem:[%s14] sm:$0x1]
        %v1753 = vlaneseq
        %v1754 = vshrl.u32 %v1753, 7
        %v1755 = vsub.s32 0, %v1754
        %v1756 = vrot.slane %v1751, %v1755
        %1758 = vmatprep.subr.mxu0 0.0
        %1759 = vmatpush1.msra.mxu0 %v1735
        %1760 = vmatprep.subr.mxu0 0.0
        %1761 = vmatpush1.msra.mxu0 %v1736
        %1762 = vmatprep.subr.mxu0 0.0
        %1763 = vmatpush1.msra.mxu0 %v1737
        %1764 = vmatprep.subr.mxu0 0.0
        %1765 = vmatpush1.msra.mxu0 %v1738
        %1766 = vmatprep.subr.mxu0 0.0
        %1767 = vmatpush1.msra.mxu0 %v1739
        %1768 = vmatprep.subr.mxu0 0.0
        %1769 = vmatpush1.msra.mxu0 %v1740
        %1770 = vmatprep.subr.mxu0 0.0
        %1771 = vmatpush1.msra.mxu0 %v1741
        %1772 = vmatprep.subr.mxu0 0.0
        %1773 = vmatpush1.msra.mxu0 %v1742
        %1774 = vmatprep.subr.mxu0 0.0
        %1775 = vmatpush1.msra.mxu0 %v1743
        %1776 = vmatprep.subr.mxu0 0.0
        %1777 = vmatpush1.msra.mxu0 %v1744
        %1778 = vmatprep.subr.mxu0 0.0
        %1779 = vmatpush1.msra.mxu0 %v1745
        %1780 = vmatprep.subr.mxu0 0.0
        %1781 = vmatpush1.msra.mxu0 %v1746
        %1782 = vmatprep.subr.mxu0 0.0
        %1783 = vmatpush1.msra.mxu0 %v1747
        %1784 = vmatprep.subr.mxu0 0.0
        %1785 = vmatpush1.msra.mxu0 %v1748
        %1786 = vmatprep.subr.mxu0 0.0
        %1787 = vmatpush1.msra.mxu0 %v1749
        %1788 = vmatprep.subr.mxu0 0.0
        %1789 = vmatpush1.msra.mxu0 %v1750
        %1790 = vmatprep.subr.mxu0 0.0
        %1791 = vmatpush1.msra.mxu0 0.0
        %1792 = vmatprep.subr.mxu0 0.0
        %1793 = vmatpush1.msra.mxu0 0.0
        %1794 = vmatprep.subr.mxu0 0.0
        %1795 = vmatpush1.msra.mxu0 0.0
        %1796 = vmatprep.subr.mxu0 0.0
        %1797 = vmatpush1.msra.mxu0 0.0
        %1798 = vmatprep.subr.mxu0 0.0
        %1799 = vmatpush1.msra.mxu0 0.0
        %1800 = vmatprep.subr.mxu0 0.0
        %1801 = vmatpush1.msra.mxu0 0.0
        %1802 = vmatprep.subr.mxu0 0.0
        %1803 = vmatpush1.msra.mxu0 0.0
        %1804 = vmatprep.subr.mxu0 0.0
        %1805 = vmatpush1.msra.mxu0 0.0
        %1806 = vmatprep.subr.mxu0 0.0
        %1807 = vmatpush1.msra.mxu0 0.0
        %1808 = vmatprep.subr.mxu0 0.0
        %1809 = vmatpush1.msra.mxu0 0.0
        %1810 = vmatprep.subr.mxu0 0.0
        %1811 = vmatpush1.msra.mxu0 0.0
        %1812 = vmatprep.subr.mxu0 0.0
        %1813 = vmatpush1.msra.mxu0 0.0
        %1814 = vmatprep.subr.mxu0 0.0
        %1815 = vmatpush1.msra.mxu0 0.0
        %1816 = vmatprep.subr.mxu0 0.0
        %1817 = vmatpush1.msra.mxu0 0.0
        %1818 = vmatprep.subr.mxu0 0.0
        %1819 = vmatpush1.msra.mxu0 0.0
        %1820 = vmatprep.subr.mxu0 0.0
        %1821 = vmatpush1.msra.mxu0 0.0
        %1822 = vmatprep.mubr.f32.mxu0 0.0
        %1823 = vmatmul.mubr.f32.gmra.mrb[0].mxu0 %v1734
        %v1824 = vpop.f32.mrb[0].mxu0
        %v1825 = vadd.f32 %v1756, %v1824
        %v1826 = vpop.f32.mrb[0].mxu0
        %1827 = vdwg.mxu0
        %v1828 = vadd.f32 %v1617, %v1825
        %1829 = vst.msk [vmem:[%s485] sm:$0xff] %vm492, %v1828
        %s1830 = sand.u32 %s357, 1
        %s1831 = scalar_lea.sflag [#allocation3], %s1830
        %s1832 = sand.u32 %s357, 1
        %s1833 = smul.addr %s1832, 8
        %s1834 = scalar_lea.vmem [#allocation2], %s1833
        // Predicated region
        $region81: #{tpu_custom_call.1} parent=79 // pred_check
          %p1835 = pneg %p367
        $region82: #{tpu_custom_call.1} parent=79 // pred_check_branch
          %1837 = sbr.rel (%p1835) target = $region84
        $region83: #{tpu_custom_call.1} parent=79 // pred_region
          %s1839 = ssub.s32 128, 128
          %1840 = vsyncadd %s1831, %s1839
          %s1841 = smul.addr %s29, 128
          %s1842 = scalar_lea.hbm %s15, %s1841
          %s1844 = sshll.u32 %s1834, 4
          %s1845 = int_to_ptr.vmem [resolvable:$true] %s1844
          %1847 = dma.vmem_to_hbm [thread:$0]  %s1845, 128, %s1842, %s1831
        $region84: #{tpu_custom_call.1} parent=79 // pred_fallthru
          _
      $region80: #{tpu_custom_call.1} parent=5 // pred_fallthru
        _
      %p1848 = scmp.le.s32.totalorder 2, %s24
      // Predicated region
      $region85: #{tpu_custom_call.1} parent=5 // pred_check
        %p1849 = pneg %p1848
      $region86: #{tpu_custom_call.1} parent=5 // pred_check_branch
        %1851 = sbr.rel (%p1849) target = $region88
      $region87: #{tpu_custom_call.1} parent=5 // pred_region
        %s1852 = ssub.s32 %s24, 2
        // Predicated region
        $region89: #{tpu_custom_call.1} parent=87 // pred_check
          %p1853 = pneg %p373
        $region90: #{tpu_custom_call.1} parent=87 // pred_check_branch
          %1855 = sbr.rel (%p1853) target = $region92
        $region91: #{tpu_custom_call.1} parent=87 // pred_region
          %s1856 = sand.u32 %s358, 1
          %s1857 = scalar_lea.sflag [#allocation3], %s1856
          %s1858 = sand.u32 %s358, 1
          %s1859 = smul.addr %s1858, 8
          %s1860 = scalar_lea.vmem [#allocation2], %s1859
          %1861 = dma.done %s1857, 128
        $region92: #{tpu_custom_call.1} parent=87 // pred_fallthru
          _
      $region88: #{tpu_custom_call.1} parent=5 // pred_fallthru
        _
    $region6: #{tpu_custom_call.1} parent=1 // loop_footer
      %s28 = sadd.s32 1, %s24
    $region7: #{tpu_custom_call.1} parent=1 // loop_footer_branch
      %23 = sbr.rel target = $region3
    $region8: #{tpu_custom_call.1} parent=1 // loop_exit
      _
    %1862 = vsyncpa [#allocation3], 1
    %s1863 = scalar_lea.sflag [#allocation3], 1
    %1864 = vsyncpa %s1863, 1

</llo_original>
